<compile_context>
chip_gen: v5e
topology: v5e:2x2
jax: 0.10.0
libtpu: 0.0.40
codegen_flags: <defaults>
</compile_context>

<pallas_src>
import functools

import jax
import jax.numpy as jnp
from jax import lax
from jax.experimental import pallas as pl
from jax.experimental.pallas import tpu as pltpu
import numpy as np


def transformer_block_kernel(
    x_ref,                                # (1, W, D)  f32 activations
    wq_ref, wk_ref, wv_ref, wo_ref,       # (D, D)     bf16, pre-transposed (y = x @ w)
    bq_ref, bk_ref, bv_ref, bo_ref,       # (1, D)     f32
    g1_ref, be1_ref, g2_ref, be2_ref,     # (1, D)     f32 LayerNorm gamma/beta
    w1_ref, bf1_ref,                      # (D, F) bf16, (1, F) f32
    w2_ref, bf2_ref,                      # (F, D) bf16, (1, D) f32
    o_ref,                                # (1, W, D)
    ctx_ref,                              # (W, D) bf16 scratch: per-head context cols
    *, nhead: int, elementwise_bf16: bool,
):
    f32, bf16 = jnp.float32, jnp.bfloat16
    ew = bf16 if elementwise_bf16 else f32        # exp/GELU dtype (bf16 on v6e/v7x)
    x = x_ref[0].astype(f32)                      # (W, D) residual path stays f32
    W, D = x.shape
    H = nhead
    dh = D // H

    x_bf = x.astype(bf16)

    # ---- QKV projections: bf16 operands on the MXU, f32 accumulation -------
    q = jnp.dot(x_bf, wq_ref[...], preferred_element_type=f32) + bq_ref[...]
    k = jnp.dot(x_bf, wk_ref[...], preferred_element_type=f32) + bk_ref[...]
    v = jnp.dot(x_bf, wv_ref[...], preferred_element_type=f32) + bv_ref[...]
    # Fold the 1/sqrt(dh) softmax scale into q once.
    q = q * jnp.float32(1.0 / np.sqrt(dh))

    # ---- Attention: unrolled per-head loop on static lane slices -----------
    # (no (W, H, dh) reshape / head-axis einsum => no XLU transposes)
    for h in range(H):
        lo, hi = h * dh, (h + 1) * dh
        qh = q[:, lo:hi].astype(bf16)             # (W, dh)
        kh = k[:, lo:hi].astype(bf16)             # (W, dh)
        vh = v[:, lo:hi].astype(bf16)             # (W, dh)
        # s = qh @ kh^T without materializing the transpose.
        s = lax.dot_general(qh, kh, (((1,), (1,)), ((), ())),
                            preferred_element_type=f32)          # (W, W) f32
        s = s - jnp.max(s, axis=-1, keepdims=True)
        p = jnp.exp(s.astype(ew))                                 # EUP; bf16 on v6e/v7x
        l = jnp.sum(p, axis=-1, keepdims=True, dtype=f32)         # (W, 1) f32
        inv_l = pl.reciprocal(l, approx=True)                     # EUP slot
        # Normalize the f32-accumulated context (W*dh mults), not p (W*W mults).
        ctx_h = jnp.dot(p.astype(bf16), vh, preferred_element_type=f32)
        ctx_ref[:, lo:hi] = (ctx_h * inv_l).astype(bf16)

    attn_out = jnp.dot(ctx_ref[...], wo_ref[...],
                       preferred_element_type=f32) + bo_ref[...]

    # ---- Residual + LayerNorm (f32) -----------------------------------------
    def layer_norm(hid, gamma, beta, eps=1e-5):
        mu = jnp.mean(hid, axis=-1, keepdims=True)
        xc = hid - mu
        var = jnp.mean(xc * xc, axis=-1, keepdims=True)
        return xc * lax.rsqrt(var + eps) * gamma + beta

    x1 = layer_norm(x + attn_out, g1_ref[...], be1_ref[...])

    # ---- FFN: Linear -> exact GELU -> Linear (bf16 MXU, f32 accumulate) -----
    hid = jnp.dot(x1.astype(bf16), w1_ref[...],
                  preferred_element_type=f32) + bf1_ref[...]
    h_e = hid.astype(ew)                                          # GELU in ew dtype
    gelu = h_e * (0.5 * (1.0 + lax.erf(h_e * 0.7071067811865476)))
    ff = jnp.dot(gelu.astype(bf16), w2_ref[...],
                 preferred_element_type=f32) + bf2_ref[...]

    x2 = layer_norm(x1 + ff, g2_ref[...], be2_ref[...])
    o_ref[0] = x2.astype(o_ref.dtype)


def _vmem_capacity_bytes():
    try:
        return int(pltpu.get_tpu_info().vmem_capacity_bytes)
    except Exception:
        return 64 << 20      # conservative: v7x per-TensorCore VMEM


def _vmem_limit_bytes(W, D, F, single_buffer_weights):
    """VMEM budget: weights (at actual buffer depth) + slabs + intermediates,
    clamped to physical capacity minus headroom (fits v7x's 64 MiB)."""
    bf, f4 = 2, 4
    wbuf = 1 if single_buffer_weights else 2
    weights = (4 * D * D + 2 * D * F) * bf * wbuf        # bf16 matmul weights
    smalls = (9 * D + F) * f4 * wbuf                     # biases / LN params
    io = 2 * (W * D) * f4 * 2                            # x + out slabs, double buffered
    acts = (6 * W * D + 2 * W * F + 3 * W * W) * f4      # q/k/v/x1/ff, hidden, scores
    ctx = W * D * bf                                     # bf16 ctx scratch
    est = weights + smalls + io + acts + ctx + (4 << 20)  # + compiler internal headroom
    cap = _vmem_capacity_bytes()
    return int(min(max(est, 32 << 20), cap - (8 << 20)))


def _build_call(B, W, D, F, nhead, out_dtype, *, single_buffer_weights,
                elementwise_bf16):
    const_kwargs = (
        dict(pipeline_mode=pl.Buffered(1)) if single_buffer_weights else {}
    )

    def const(shape):
        # Grid-invariant weights/biases: single-buffer when supported (pure VMEM win).
        return pl.BlockSpec(shape, lambda b: (0, 0), **const_kwargs)

    in_specs = [
        pl.BlockSpec((1, W, D), lambda b: (b, 0, 0)),                   # x
        const((D, D)), const((D, D)), const((D, D)), const((D, D)),    # wq wk wv wo
        const((1, D)), const((1, D)), const((1, D)), const((1, D)),    # bq bk bv bo
        const((1, D)), const((1, D)), const((1, D)), const((1, D)),    # g1 be1 g2 be2
        const((D, F)), const((1, F)),                                   # w1 bf1
        const((F, D)), const((1, D)),                                   # w2 bf2
    ]

    return pl.pallas_call(
        functools.partial(transformer_block_kernel, nhead=nhead,
                          elementwise_bf16=elementwise_bf16),
        out_shape=jax.ShapeDtypeStruct((B, W, D), out_dtype),
        grid_spec=pltpu.PrefetchScalarGridSpec(
            num_scalar_prefetch=0,
            grid=(B,),
            in_specs=in_specs,
            out_specs=pl.BlockSpec((1, W, D), lambda b: (b, 0, 0)),
            scratch_shapes=[pltpu.VMEM((W, D), jnp.bfloat16)],
        ),
        compiler_params=pltpu.CompilerParams(
            dimension_semantics=("parallel",),
            vmem_limit_bytes=_vmem_limit_bytes(W, D, F, single_buffer_weights),
        ),
    )


def _single_buffer_supported():
    """Cheap constructor probe: does this jax accept pipeline_mode=pl.Buffered(1)?"""
    try:
        pl.BlockSpec((8, 128), lambda b: (0, 0), pipeline_mode=pl.Buffered(1))
        return True
    except Exception:
        return False


def _elementwise_bf16_ok():
    """bf16 exp/GELU only on chips with a bf16 VPU/EUP (v6e, v7x and newer)."""
    try:
        kind = jax.devices()[0].device_kind.lower()
    except Exception:
        return False
    return not any(tag in kind for tag in ("v2", "v3", "v4", "v5"))


def transformer_block(x, params, nhead):
    B, W, D = x.shape
    F = params['w1'].shape[1]
    assert D % nhead == 0, "d_model must be divisible by nhead"

    bf16 = jnp.bfloat16
    args = (
        x,
        params['wq'].astype(bf16), params['wk'].astype(bf16),
        params['wv'].astype(bf16), params['wo'].astype(bf16),
        params['bq'], params['bk'], params['bv'], params['bo'],
        params['g1'], params['be1'], params['g2'], params['be2'],
        params['w1'].astype(bf16), params['bf1'],
        params['w2'].astype(bf16), params['bf2'],
    )

    build = functools.partial(_build_call, B, W, D, F, nhead, x.dtype,
                              elementwise_bf16=_elementwise_bf16_ok())

    if _single_buffer_supported():
        try:
            return build(single_buffer_weights=True)(*args)
        except Exception as e:
            # Narrow fallback: only retrace with default double buffering when the
            # failure is about pipeline_mode buffering; anything else is genuine.
            msg = str(e)
            if ("pipeline_mode" not in msg and "Buffered" not in msg
                    and "buffer_count" not in msg):
                raise
    return build(single_buffer_weights=False)(*args)


def reference_block(x, params, nhead, *, matmul_dtype=jnp.float32):
    """Pure-JAX reference mirroring torch eval-mode semantics.

    With matmul_dtype=bfloat16, every matmul operand is rounded to bf16 (with
    f32 accumulation), mirroring the kernel's MXU precision for a tight check.
    """
    B, W, D = x.shape
    dh = D // nhead
    scale = 1.0 / np.sqrt(dh)
    c = lambda a: a.astype(matmul_dtype).astype(jnp.float32)
    prec = (lax.Precision.HIGHEST if matmul_dtype == jnp.float32
            else lax.Precision.DEFAULT)
    mm = functools.partial(jnp.matmul, precision=prec)
    es = functools.partial(jnp.einsum, precision=prec)

    q = mm(c(x), c(params['wq'])) + params['bq']
    k = mm(c(x), c(params['wk'])) + params['bk']
    v = mm(c(x), c(params['wv'])) + params['bv']
    qh = q.reshape(B, W, nhead, dh)
    kh = k.reshape(B, W, nhead, dh)
    vh = v.reshape(B, W, nhead, dh)
    s = es('bihd,bjhd->bhij', c(qh), c(kh)) * scale
    p = jax.nn.softmax(s, axis=-1)
    ctx = es('bhij,bjhd->bihd', c(p), c(vh)).reshape(B, W, D)
    attn = mm(c(ctx), c(params['wo'])) + params['bo']

    def ln(h, g, b, eps=1e-5):
        mu = jnp.mean(h, axis=-1, keepdims=True)
        var = jnp.mean((h - mu) ** 2, axis=-1, keepdims=True)
        return (h - mu) / jnp.sqrt(var + eps) * g + b

    x1 = ln(x + attn, params['g1'], params['be1'])
    h = mm(c(x1), c(params['w1'])) + params['bf1']
    h = 0.5 * h * (1.0 + lax.erf(h / np.sqrt(2.0)))
    ff = mm(c(h), c(params['w2'])) + params['bf2']
    return ln(x1 + ff, params['g2'], params['be2'])


def init_params(key, d_model, dim_feedforward):
    D, F = d_model, dim_feedforward
    ks = jax.random.split(key, 8)
    s = 0.1
    params = {
        # projection weights stored pre-transposed: activation @ w
        'wq': jax.random.normal(ks[0], (D, D), jnp.float32) * s,
        'wk': jax.random.normal(ks[1], (D, D), jnp.float32) * s,
        'wv': jax.random.normal(ks[2], (D, D), jnp.float32) * s,
        'wo': jax.random.normal(ks[3], (D, D), jnp.float32) * s,
        'bq': jax.random.normal(ks[4], (1, D), jnp.float32) * s,
        'bk': jax.random.normal(ks[5], (1, D), jnp.float32) * s,
        'bv': jax.random.normal(ks[6], (1, D), jnp.float32) * s,
        'bo': jnp.zeros((1, D), jnp.float32),
        'g1': jnp.ones((1, D), jnp.float32),
        'be1': jnp.zeros((1, D), jnp.float32),
        'g2': jnp.ones((1, D), jnp.float32),
        'be2': jnp.zeros((1, D), jnp.float32),
        'w1': jax.random.normal(ks[7], (D, F), jnp.float32) * s,
        'bf1': jnp.zeros((1, F), jnp.float32),
        'w2': jax.random.normal(jax.random.fold_in(key, 99), (F, D), jnp.float32) * s,
        'bf2': jnp.zeros((1, D), jnp.float32),
    }
    return params


if __name__ == "__main__":
    B, W, D = 2, 8, 32          # batch, seq (window), d_model
    NHEAD = 4                   # head dim = 8
    FF = 64                     # dim_feedforward
    # NOTE: toy shapes for the smoke test only; D=32 is lane-sparse so the MXU
    # is deliberately under-utilized here -- benchmark at real (128/256-aligned)
    # dims, with the query-tile / flash-KV / F-chunk TODOs applied for v7x.

    key = jax.random.PRNGKey(0)
    kx, kp = jax.random.split(key)
    x = jax.random.normal(kx, (B, W, D), jnp.float32)
    params = init_params(kp, D, FF)

    out = jax.block_until_ready(transformer_block(x, params, NHEAD))
    assert out.shape == (B, W, D)

    # Check vs. a reference that rounds matmul operands to bf16 exactly like
    # the kernel (f32 accumulation). Kernel additionally does exp/GELU in bf16
    # on v6e/v7x and uses an approximate reciprocal, hence the small margin.
    ref_bf16 = reference_block(x, params, NHEAD, matmul_dtype=jnp.bfloat16)
    np.testing.assert_allclose(np.asarray(out), np.asarray(ref_bf16),
                               rtol=3e-2, atol=3e-2)
    # ... plus a looser check vs. full-f32 torch-eval semantics (bf16 MXU
    # operands trade a little precision for 2-4x matmul throughput).
    ref_f32 = reference_block(x, params, NHEAD)
    np.testing.assert_allclose(np.asarray(out), np.asarray(ref_f32),
                               rtol=6e-2, atol=6e-2)

    print("KERNEL_OK")
</pallas_src>

<mosaic_0001>
module attributes {stable_mosaic.version = 11 : i64} {
  func.func @transformer_block_kernel(%arg0: i32, %arg1: memref<1x8x32xf32, #tpu.memory_space<vmem>>, %arg2: memref<32x32xbf16, #tpu.memory_space<vmem>>, %arg3: memref<32x32xbf16, #tpu.memory_space<vmem>>, %arg4: memref<32x32xbf16, #tpu.memory_space<vmem>>, %arg5: memref<32x32xbf16, #tpu.memory_space<vmem>>, %arg6: memref<1x32xf32, #tpu.memory_space<vmem>>, %arg7: memref<1x32xf32, #tpu.memory_space<vmem>>, %arg8: memref<1x32xf32, #tpu.memory_space<vmem>>, %arg9: memref<1x32xf32, #tpu.memory_space<vmem>>, %arg10: memref<1x32xf32, #tpu.memory_space<vmem>>, %arg11: memref<1x32xf32, #tpu.memory_space<vmem>>, %arg12: memref<1x32xf32, #tpu.memory_space<vmem>>, %arg13: memref<1x32xf32, #tpu.memory_space<vmem>>, %arg14: memref<32x64xbf16, #tpu.memory_space<vmem>>, %arg15: memref<1x64xf32, #tpu.memory_space<vmem>>, %arg16: memref<64x32xbf16, #tpu.memory_space<vmem>>, %arg17: memref<1x32xf32, #tpu.memory_space<vmem>>, %arg18: memref<1x8x32xf32, #tpu.memory_space<vmem>>, %arg19: memref<8x32xbf16, #tpu.memory_space<vmem>>) attributes {dimension_semantics = [#tpu.dimension_semantics<parallel>], iteration_bounds = array<i64: 2>, scalar_prefetch = 0 : i64, scratch_operands = 1 : i64, tpu.core_type = #tpu.core_type<tc>, window_params = [{transform_indices = @transform_0, window_bounds = array<i64: 1, 8, 32>}, {pipeline_mode = #tpu.pipeline_mode<synchronous>, transform_indices = @transform_1, window_bounds = array<i64: 32, 32>}, {pipeline_mode = #tpu.pipeline_mode<synchronous>, transform_indices = @transform_2, window_bounds = array<i64: 32, 32>}, {pipeline_mode = #tpu.pipeline_mode<synchronous>, transform_indices = @transform_3, window_bounds = array<i64: 32, 32>}, {pipeline_mode = #tpu.pipeline_mode<synchronous>, transform_indices = @transform_4, window_bounds = array<i64: 32, 32>}, {pipeline_mode = #tpu.pipeline_mode<synchronous>, transform_indices = @transform_5, window_bounds = array<i64: 1, 32>}, {pipeline_mode = #tpu.pipeline_mode<synchronous>, transform_indices = @transform_6, window_bounds = array<i64: 1, 32>}, {pipeline_mode = #tpu.pipeline_mode<synchronous>, transform_indices = @transform_7, window_bounds = array<i64: 1, 32>}, {pipeline_mode = #tpu.pipeline_mode<synchronous>, transform_indices = @transform_8, window_bounds = array<i64: 1, 32>}, {pipeline_mode = #tpu.pipeline_mode<synchronous>, transform_indices = @transform_9, window_bounds = array<i64: 1, 32>}, {pipeline_mode = #tpu.pipeline_mode<synchronous>, transform_indices = @transform_10, window_bounds = array<i64: 1, 32>}, {pipeline_mode = #tpu.pipeline_mode<synchronous>, transform_indices = @transform_11, window_bounds = array<i64: 1, 32>}, {pipeline_mode = #tpu.pipeline_mode<synchronous>, transform_indices = @transform_12, window_bounds = array<i64: 1, 32>}, {pipeline_mode = #tpu.pipeline_mode<synchronous>, transform_indices = @transform_13, window_bounds = array<i64: 32, 64>}, {pipeline_mode = #tpu.pipeline_mode<synchronous>, transform_indices = @transform_14, window_bounds = array<i64: 1, 64>}, {pipeline_mode = #tpu.pipeline_mode<synchronous>, transform_indices = @transform_15, window_bounds = array<i64: 64, 32>}, {pipeline_mode = #tpu.pipeline_mode<synchronous>, transform_indices = @transform_16, window_bounds = array<i64: 1, 32>}, {transform_indices = @transform_17, window_bounds = array<i64: 1, 8, 32>}]} {
    %c0 = arith.constant 0 : index
    %c0_0 = arith.constant 0 : index
    %c0_1 = arith.constant 0 : index
    %0 = vector.load %arg1[%c0, %c0_0, %c0_1] : memref<1x8x32xf32, #tpu.memory_space<vmem>>, vector<1x8x32xf32>
    %1 = vector.shape_cast %0 : vector<1x8x32xf32> to vector<8x32xf32>
    %2 = arith.truncf %1 : vector<8x32xf32> to vector<8x32xbf16>
    %c0_2 = arith.constant 0 : index
    %c0_3 = arith.constant 0 : index
    %3 = vector.load %arg2[%c0_2, %c0_3] : memref<32x32xbf16, #tpu.memory_space<vmem>>, vector<32x32xbf16>
    %cst = arith.constant dense<0.000000e+00> : vector<8x32xf32>
    %4 = tpu.matmul %2, %3, %cst {dimension_numbers = #tpu.dot_dimension_numbers<[1], [0], [0], [1], [0, 0, 1, 1], [], []>} : vector<8x32xbf16>, vector<32x32xbf16>, vector<8x32xf32> -> vector<8x32xf32>
    %c0_4 = arith.constant 0 : index
    %c0_5 = arith.constant 0 : index
    %5 = vector.load %arg6[%c0_4, %c0_5] : memref<1x32xf32, #tpu.memory_space<vmem>>, vector<1x32xf32>
    %6 = vector.broadcast %5 : vector<1x32xf32> to vector<8x32xf32>
    %7 = arith.addf %4, %6 : vector<8x32xf32>
    %c0_6 = arith.constant 0 : index
    %c0_7 = arith.constant 0 : index
    %8 = vector.load %arg3[%c0_6, %c0_7] : memref<32x32xbf16, #tpu.memory_space<vmem>>, vector<32x32xbf16>
    %cst_8 = arith.constant dense<0.000000e+00> : vector<8x32xf32>
    %9 = tpu.matmul %2, %8, %cst_8 {dimension_numbers = #tpu.dot_dimension_numbers<[1], [0], [0], [1], [0, 0, 1, 1], [], []>} : vector<8x32xbf16>, vector<32x32xbf16>, vector<8x32xf32> -> vector<8x32xf32>
    %c0_9 = arith.constant 0 : index
    %c0_10 = arith.constant 0 : index
    %10 = vector.load %arg7[%c0_9, %c0_10] : memref<1x32xf32, #tpu.memory_space<vmem>>, vector<1x32xf32>
    %11 = vector.broadcast %10 : vector<1x32xf32> to vector<8x32xf32>
    %12 = arith.addf %9, %11 : vector<8x32xf32>
    %c0_11 = arith.constant 0 : index
    %c0_12 = arith.constant 0 : index
    %13 = vector.load %arg4[%c0_11, %c0_12] : memref<32x32xbf16, #tpu.memory_space<vmem>>, vector<32x32xbf16>
    %cst_13 = arith.constant dense<0.000000e+00> : vector<8x32xf32>
    %14 = tpu.matmul %2, %13, %cst_13 {dimension_numbers = #tpu.dot_dimension_numbers<[1], [0], [0], [1], [0, 0, 1, 1], [], []>} : vector<8x32xbf16>, vector<32x32xbf16>, vector<8x32xf32> -> vector<8x32xf32>
    %c0_14 = arith.constant 0 : index
    %c0_15 = arith.constant 0 : index
    %15 = vector.load %arg8[%c0_14, %c0_15] : memref<1x32xf32, #tpu.memory_space<vmem>>, vector<1x32xf32>
    %16 = vector.broadcast %15 : vector<1x32xf32> to vector<8x32xf32>
    %17 = arith.addf %14, %16 : vector<8x32xf32>
    %cst_16 = arith.constant 0.353553385 : f32
    %18 = vector.broadcast %cst_16 : f32 to vector<8x32xf32>
    %19 = arith.mulf %7, %18 : vector<8x32xf32>
    %20 = vector.extract_strided_slice %19 {offsets = [0, 0], sizes = [8, 8], strides = [1, 1]} : vector<8x32xf32> to vector<8x8xf32>
    %21 = arith.truncf %20 : vector<8x8xf32> to vector<8x8xbf16>
    %22 = vector.extract_strided_slice %12 {offsets = [0, 0], sizes = [8, 8], strides = [1, 1]} : vector<8x32xf32> to vector<8x8xf32>
    %23 = arith.truncf %22 : vector<8x8xf32> to vector<8x8xbf16>
    %24 = vector.extract_strided_slice %17 {offsets = [0, 0], sizes = [8, 8], strides = [1, 1]} : vector<8x32xf32> to vector<8x8xf32>
    %25 = arith.truncf %24 : vector<8x8xf32> to vector<8x8xbf16>
    %cst_17 = arith.constant dense<0.000000e+00> : vector<8x8xf32>
    %26 = tpu.matmul %21, %23, %cst_17 {dimension_numbers = #tpu.dot_dimension_numbers<[1], [1], [0], [0], [0, 0, 1, 0], [], []>} : vector<8x8xbf16>, vector<8x8xbf16>, vector<8x8xf32> -> vector<8x8xf32>
    %cst_18 = arith.constant dense<0xFF800000> : vector<8xf32>
    %27 = vector.multi_reduction <maximumf>, %26, %cst_18 [1] : vector<8x8xf32> to vector<8xf32>
    %28 = vector.shape_cast %27 : vector<8xf32> to vector<8x1xf32>
    %29 = vector.broadcast %28 : vector<8x1xf32> to vector<8x8xf32>
    %30 = arith.subf %26, %29 : vector<8x8xf32>
    %31 = arith.truncf %30 : vector<8x8xf32> to vector<8x8xbf16>
    %32 = math.exp %31 : vector<8x8xbf16>
    %33 = arith.extf %32 : vector<8x8xbf16> to vector<8x8xf32>
    %cst_19 = arith.constant dense<0.000000e+00> : vector<8xf32>
    %34 = vector.multi_reduction <add>, %33, %cst_19 [1] : vector<8x8xf32> to vector<8xf32>
    %35 = vector.shape_cast %34 : vector<8xf32> to vector<8x1xf32>
    %36 = tpu.reciprocal %35 {approx = true} : vector<8x1xf32> -> vector<8x1xf32>
    %cst_20 = arith.constant dense<0.000000e+00> : vector<8x8xf32>
    %37 = tpu.matmul %32, %25, %cst_20 {dimension_numbers = #tpu.dot_dimension_numbers<[1], [0], [0], [1], [0, 0, 1, 1], [], []>} : vector<8x8xbf16>, vector<8x8xbf16>, vector<8x8xf32> -> vector<8x8xf32>
    %38 = vector.broadcast %36 : vector<8x1xf32> to vector<8x8xf32>
    %39 = arith.mulf %37, %38 : vector<8x8xf32>
    %40 = arith.truncf %39 : vector<8x8xf32> to vector<8x8xbf16>
    %c0_21 = arith.constant 0 : index
    %c0_22 = arith.constant 0 : index
    %41 = vector.load %arg19[%c0_21, %c0_22] : memref<8x32xbf16, #tpu.memory_space<vmem>>, vector<8x8xbf16>
    tpu.vector_store %arg19[%c0_21, %c0_22], %40 {strides = array<i32>} : memref<8x32xbf16, #tpu.memory_space<vmem>>, vector<8x8xbf16>,
    %42 = vector.extract_strided_slice %19 {offsets = [0, 8], sizes = [8, 8], strides = [1, 1]} : vector<8x32xf32> to vector<8x8xf32>
    %43 = arith.truncf %42 : vector<8x8xf32> to vector<8x8xbf16>
    %44 = vector.extract_strided_slice %12 {offsets = [0, 8], sizes = [8, 8], strides = [1, 1]} : vector<8x32xf32> to vector<8x8xf32>
    %45 = arith.truncf %44 : vector<8x8xf32> to vector<8x8xbf16>
    %46 = vector.extract_strided_slice %17 {offsets = [0, 8], sizes = [8, 8], strides = [1, 1]} : vector<8x32xf32> to vector<8x8xf32>
    %47 = arith.truncf %46 : vector<8x8xf32> to vector<8x8xbf16>
    %cst_23 = arith.constant dense<0.000000e+00> : vector<8x8xf32>
    %48 = tpu.matmul %43, %45, %cst_23 {dimension_numbers = #tpu.dot_dimension_numbers<[1], [1], [0], [0], [0, 0, 1, 0], [], []>} : vector<8x8xbf16>, vector<8x8xbf16>, vector<8x8xf32> -> vector<8x8xf32>
    %cst_24 = arith.constant dense<0xFF800000> : vector<8xf32>
    %49 = vector.multi_reduction <maximumf>, %48, %cst_24 [1] : vector<8x8xf32> to vector<8xf32>
    %50 = vector.shape_cast %49 : vector<8xf32> to vector<8x1xf32>
    %51 = vector.broadcast %50 : vector<8x1xf32> to vector<8x8xf32>
    %52 = arith.subf %48, %51 : vector<8x8xf32>
    %53 = arith.truncf %52 : vector<8x8xf32> to vector<8x8xbf16>
    %54 = math.exp %53 : vector<8x8xbf16>
    %55 = arith.extf %54 : vector<8x8xbf16> to vector<8x8xf32>
    %cst_25 = arith.constant dense<0.000000e+00> : vector<8xf32>
    %56 = vector.multi_reduction <add>, %55, %cst_25 [1] : vector<8x8xf32> to vector<8xf32>
    %57 = vector.shape_cast %56 : vector<8xf32> to vector<8x1xf32>
    %58 = tpu.reciprocal %57 {approx = true} : vector<8x1xf32> -> vector<8x1xf32>
    %cst_26 = arith.constant dense<0.000000e+00> : vector<8x8xf32>
    %59 = tpu.matmul %54, %47, %cst_26 {dimension_numbers = #tpu.dot_dimension_numbers<[1], [0], [0], [1], [0, 0, 1, 1], [], []>} : vector<8x8xbf16>, vector<8x8xbf16>, vector<8x8xf32> -> vector<8x8xf32>
    %60 = vector.broadcast %58 : vector<8x1xf32> to vector<8x8xf32>
    %61 = arith.mulf %59, %60 : vector<8x8xf32>
    %62 = arith.truncf %61 : vector<8x8xf32> to vector<8x8xbf16>
    %c0_27 = arith.constant 0 : index
    %c8 = arith.constant 8 : index
    %63 = vector.load %arg19[%c0_27, %c8] : memref<8x32xbf16, #tpu.memory_space<vmem>>, vector<8x8xbf16>
    tpu.vector_store %arg19[%c0_27, %c8], %62 {strides = array<i32>} : memref<8x32xbf16, #tpu.memory_space<vmem>>, vector<8x8xbf16>,
    %64 = vector.extract_strided_slice %19 {offsets = [0, 16], sizes = [8, 8], strides = [1, 1]} : vector<8x32xf32> to vector<8x8xf32>
    %65 = arith.truncf %64 : vector<8x8xf32> to vector<8x8xbf16>
    %66 = vector.extract_strided_slice %12 {offsets = [0, 16], sizes = [8, 8], strides = [1, 1]} : vector<8x32xf32> to vector<8x8xf32>
    %67 = arith.truncf %66 : vector<8x8xf32> to vector<8x8xbf16>
    %68 = vector.extract_strided_slice %17 {offsets = [0, 16], sizes = [8, 8], strides = [1, 1]} : vector<8x32xf32> to vector<8x8xf32>
    %69 = arith.truncf %68 : vector<8x8xf32> to vector<8x8xbf16>
    %cst_28 = arith.constant dense<0.000000e+00> : vector<8x8xf32>
    %70 = tpu.matmul %65, %67, %cst_28 {dimension_numbers = #tpu.dot_dimension_numbers<[1], [1], [0], [0], [0, 0, 1, 0], [], []>} : vector<8x8xbf16>, vector<8x8xbf16>, vector<8x8xf32> -> vector<8x8xf32>
    %cst_29 = arith.constant dense<0xFF800000> : vector<8xf32>
    %71 = vector.multi_reduction <maximumf>, %70, %cst_29 [1] : vector<8x8xf32> to vector<8xf32>
    %72 = vector.shape_cast %71 : vector<8xf32> to vector<8x1xf32>
    %73 = vector.broadcast %72 : vector<8x1xf32> to vector<8x8xf32>
    %74 = arith.subf %70, %73 : vector<8x8xf32>
    %75 = arith.truncf %74 : vector<8x8xf32> to vector<8x8xbf16>
    %76 = math.exp %75 : vector<8x8xbf16>
    %77 = arith.extf %76 : vector<8x8xbf16> to vector<8x8xf32>
    %cst_30 = arith.constant dense<0.000000e+00> : vector<8xf32>
    %78 = vector.multi_reduction <add>, %77, %cst_30 [1] : vector<8x8xf32> to vector<8xf32>
    %79 = vector.shape_cast %78 : vector<8xf32> to vector<8x1xf32>
    %80 = tpu.reciprocal %79 {approx = true} : vector<8x1xf32> -> vector<8x1xf32>
    %cst_31 = arith.constant dense<0.000000e+00> : vector<8x8xf32>
    %81 = tpu.matmul %76, %69, %cst_31 {dimension_numbers = #tpu.dot_dimension_numbers<[1], [0], [0], [1], [0, 0, 1, 1], [], []>} : vector<8x8xbf16>, vector<8x8xbf16>, vector<8x8xf32> -> vector<8x8xf32>
    %82 = vector.broadcast %80 : vector<8x1xf32> to vector<8x8xf32>
    %83 = arith.mulf %81, %82 : vector<8x8xf32>
    %84 = arith.truncf %83 : vector<8x8xf32> to vector<8x8xbf16>
    %c0_32 = arith.constant 0 : index
    %c16 = arith.constant 16 : index
    %85 = vector.load %arg19[%c0_32, %c16] : memref<8x32xbf16, #tpu.memory_space<vmem>>, vector<8x8xbf16>
    tpu.vector_store %arg19[%c0_32, %c16], %84 {strides = array<i32>} : memref<8x32xbf16, #tpu.memory_space<vmem>>, vector<8x8xbf16>,
    %86 = vector.extract_strided_slice %19 {offsets = [0, 24], sizes = [8, 8], strides = [1, 1]} : vector<8x32xf32> to vector<8x8xf32>
    %87 = arith.truncf %86 : vector<8x8xf32> to vector<8x8xbf16>
    %88 = vector.extract_strided_slice %12 {offsets = [0, 24], sizes = [8, 8], strides = [1, 1]} : vector<8x32xf32> to vector<8x8xf32>
    %89 = arith.truncf %88 : vector<8x8xf32> to vector<8x8xbf16>
    %90 = vector.extract_strided_slice %17 {offsets = [0, 24], sizes = [8, 8], strides = [1, 1]} : vector<8x32xf32> to vector<8x8xf32>
    %91 = arith.truncf %90 : vector<8x8xf32> to vector<8x8xbf16>
    %cst_33 = arith.constant dense<0.000000e+00> : vector<8x8xf32>
    %92 = tpu.matmul %87, %89, %cst_33 {dimension_numbers = #tpu.dot_dimension_numbers<[1], [1], [0], [0], [0, 0, 1, 0], [], []>} : vector<8x8xbf16>, vector<8x8xbf16>, vector<8x8xf32> -> vector<8x8xf32>
    %cst_34 = arith.constant dense<0xFF800000> : vector<8xf32>
    %93 = vector.multi_reduction <maximumf>, %92, %cst_34 [1] : vector<8x8xf32> to vector<8xf32>
    %94 = vector.shape_cast %93 : vector<8xf32> to vector<8x1xf32>
    %95 = vector.broadcast %94 : vector<8x1xf32> to vector<8x8xf32>
    %96 = arith.subf %92, %95 : vector<8x8xf32>
    %97 = arith.truncf %96 : vector<8x8xf32> to vector<8x8xbf16>
    %98 = math.exp %97 : vector<8x8xbf16>
    %99 = arith.extf %98 : vector<8x8xbf16> to vector<8x8xf32>
    %cst_35 = arith.constant dense<0.000000e+00> : vector<8xf32>
    %100 = vector.multi_reduction <add>, %99, %cst_35 [1] : vector<8x8xf32> to vector<8xf32>
    %101 = vector.shape_cast %100 : vector<8xf32> to vector<8x1xf32>
    %102 = tpu.reciprocal %101 {approx = true} : vector<8x1xf32> -> vector<8x1xf32>
    %cst_36 = arith.constant dense<0.000000e+00> : vector<8x8xf32>
    %103 = tpu.matmul %98, %91, %cst_36 {dimension_numbers = #tpu.dot_dimension_numbers<[1], [0], [0], [1], [0, 0, 1, 1], [], []>} : vector<8x8xbf16>, vector<8x8xbf16>, vector<8x8xf32> -> vector<8x8xf32>
    %104 = vector.broadcast %102 : vector<8x1xf32> to vector<8x8xf32>
    %105 = arith.mulf %103, %104 : vector<8x8xf32>
    %106 = arith.truncf %105 : vector<8x8xf32> to vector<8x8xbf16>
    %c0_37 = arith.constant 0 : index
    %c24 = arith.constant 24 : index
    %107 = vector.load %arg19[%c0_37, %c24] : memref<8x32xbf16, #tpu.memory_space<vmem>>, vector<8x8xbf16>
    tpu.vector_store %arg19[%c0_37, %c24], %106 {strides = array<i32>} : memref<8x32xbf16, #tpu.memory_space<vmem>>, vector<8x8xbf16>,
    %c0_38 = arith.constant 0 : index
    %c0_39 = arith.constant 0 : index
    %108 = vector.load %arg19[%c0_38, %c0_39] : memref<8x32xbf16, #tpu.memory_space<vmem>>, vector<8x32xbf16>
    %c0_40 = arith.constant 0 : index
    %c0_41 = arith.constant 0 : index
    %109 = vector.load %arg5[%c0_40, %c0_41] : memref<32x32xbf16, #tpu.memory_space<vmem>>, vector<32x32xbf16>
    %cst_42 = arith.constant dense<0.000000e+00> : vector<8x32xf32>
    %110 = tpu.matmul %108, %109, %cst_42 {dimension_numbers = #tpu.dot_dimension_numbers<[1], [0], [0], [1], [0, 0, 1, 1], [], []>} : vector<8x32xbf16>, vector<32x32xbf16>, vector<8x32xf32> -> vector<8x32xf32>
    %c0_43 = arith.constant 0 : index
    %c0_44 = arith.constant 0 : index
    %111 = vector.load %arg9[%c0_43, %c0_44] : memref<1x32xf32, #tpu.memory_space<vmem>>, vector<1x32xf32>
    %112 = vector.broadcast %111 : vector<1x32xf32> to vector<8x32xf32>
    %113 = arith.addf %110, %112 : vector<8x32xf32>
    %114 = arith.addf %1, %113 : vector<8x32xf32>
    %c0_45 = arith.constant 0 : index
    %c0_46 = arith.constant 0 : index
    %115 = vector.load %arg10[%c0_45, %c0_46] : memref<1x32xf32, #tpu.memory_space<vmem>>, vector<1x32xf32>
    %c0_47 = arith.constant 0 : index
    %c0_48 = arith.constant 0 : index
    %116 = vector.load %arg11[%c0_47, %c0_48] : memref<1x32xf32, #tpu.memory_space<vmem>>, vector<1x32xf32>
    %cst_49 = arith.constant dense<0.000000e+00> : vector<8xf32>
    %117 = vector.multi_reduction <add>, %114, %cst_49 [1] : vector<8x32xf32> to vector<8xf32>
    %118 = vector.shape_cast %117 : vector<8xf32> to vector<8x1xf32>
    %cst_50 = arith.constant 3.200000e+01 : f32
    %119 = vector.broadcast %cst_50 : f32 to vector<8x1xf32>
    %120 = arith.divf %118, %119 : vector<8x1xf32>
    %121 = vector.broadcast %120 : vector<8x1xf32> to vector<8x32xf32>
    %122 = arith.subf %114, %121 : vector<8x32xf32>
    %123 = arith.mulf %122, %122 : vector<8x32xf32>
    %cst_51 = arith.constant dense<0.000000e+00> : vector<8xf32>
    %124 = vector.multi_reduction <add>, %123, %cst_51 [1] : vector<8x32xf32> to vector<8xf32>
    %125 = vector.shape_cast %124 : vector<8xf32> to vector<8x1xf32>
    %cst_52 = arith.constant 3.200000e+01 : f32
    %126 = vector.broadcast %cst_52 : f32 to vector<8x1xf32>
    %127 = arith.divf %125, %126 : vector<8x1xf32>
    %cst_53 = arith.constant 9.99999974E-6 : f32
    %128 = vector.broadcast %cst_53 : f32 to vector<8x1xf32>
    %129 = arith.addf %127, %128 : vector<8x1xf32>
    %130 = math.rsqrt %129 : vector<8x1xf32>
    %131 = vector.broadcast %130 : vector<8x1xf32> to vector<8x32xf32>
    %132 = arith.mulf %122, %131 : vector<8x32xf32>
    %133 = vector.broadcast %115 : vector<1x32xf32> to vector<8x32xf32>
    %134 = arith.mulf %132, %133 : vector<8x32xf32>
    %135 = vector.broadcast %116 : vector<1x32xf32> to vector<8x32xf32>
    %136 = arith.addf %134, %135 : vector<8x32xf32>
    %137 = arith.truncf %136 : vector<8x32xf32> to vector<8x32xbf16>
    %c0_54 = arith.constant 0 : index
    %c0_55 = arith.constant 0 : index
    %138 = vector.load %arg14[%c0_54, %c0_55] : memref<32x64xbf16, #tpu.memory_space<vmem>>, vector<32x64xbf16>
    %cst_56 = arith.constant dense<0.000000e+00> : vector<8x64xf32>
    %139 = tpu.matmul %137, %138, %cst_56 {dimension_numbers = #tpu.dot_dimension_numbers<[1], [0], [0], [1], [0, 0, 1, 1], [], []>} : vector<8x32xbf16>, vector<32x64xbf16>, vector<8x64xf32> -> vector<8x64xf32>
    %c0_57 = arith.constant 0 : index
    %c0_58 = arith.constant 0 : index
    %140 = vector.load %arg15[%c0_57, %c0_58] : memref<1x64xf32, #tpu.memory_space<vmem>>, vector<1x64xf32>
    %141 = vector.broadcast %140 : vector<1x64xf32> to vector<8x64xf32>
    %142 = arith.addf %139, %141 : vector<8x64xf32>
    %143 = arith.truncf %142 : vector<8x64xf32> to vector<8x64xbf16>
    %cst_59 = arith.constant 7.070310e-01 : bf16
    %144 = vector.broadcast %cst_59 : bf16 to vector<8x64xbf16>
    %145 = arith.mulf %143, %144 : vector<8x64xbf16>
    %146 = math.erf %145 : vector<8x64xbf16>
    %cst_60 = arith.constant 1.000000e+00 : bf16
    %147 = vector.broadcast %cst_60 : bf16 to vector<8x64xbf16>
    %148 = arith.addf %147, %146 : vector<8x64xbf16>
    %cst_61 = arith.constant 5.000000e-01 : bf16
    %149 = vector.broadcast %cst_61 : bf16 to vector<8x64xbf16>
    %150 = arith.mulf %149, %148 : vector<8x64xbf16>
    %151 = arith.mulf %143, %150 : vector<8x64xbf16>
    %c0_62 = arith.constant 0 : index
    %c0_63 = arith.constant 0 : index
    %152 = vector.load %arg16[%c0_62, %c0_63] : memref<64x32xbf16, #tpu.memory_space<vmem>>, vector<64x32xbf16>
    %cst_64 = arith.constant dense<0.000000e+00> : vector<8x32xf32>
    %153 = tpu.matmul %151, %152, %cst_64 {dimension_numbers = #tpu.dot_dimension_numbers<[1], [0], [0], [1], [0, 0, 1, 1], [], []>} : vector<8x64xbf16>, vector<64x32xbf16>, vector<8x32xf32> -> vector<8x32xf32>
    %c0_65 = arith.constant 0 : index
    %c0_66 = arith.constant 0 : index
    %154 = vector.load %arg17[%c0_65, %c0_66] : memref<1x32xf32, #tpu.memory_space<vmem>>, vector<1x32xf32>
    %155 = vector.broadcast %154 : vector<1x32xf32> to vector<8x32xf32>
    %156 = arith.addf %153, %155 : vector<8x32xf32>
    %157 = arith.addf %136, %156 : vector<8x32xf32>
    %c0_67 = arith.constant 0 : index
    %c0_68 = arith.constant 0 : index
    %158 = vector.load %arg12[%c0_67, %c0_68] : memref<1x32xf32, #tpu.memory_space<vmem>>, vector<1x32xf32>
    %c0_69 = arith.constant 0 : index
    %c0_70 = arith.constant 0 : index
    %159 = vector.load %arg13[%c0_69, %c0_70] : memref<1x32xf32, #tpu.memory_space<vmem>>, vector<1x32xf32>
    %cst_71 = arith.constant dense<0.000000e+00> : vector<8xf32>
    %160 = vector.multi_reduction <add>, %157, %cst_71 [1] : vector<8x32xf32> to vector<8xf32>
    %161 = vector.shape_cast %160 : vector<8xf32> to vector<8x1xf32>
    %cst_72 = arith.constant 3.200000e+01 : f32
    %162 = vector.broadcast %cst_72 : f32 to vector<8x1xf32>
    %163 = arith.divf %161, %162 : vector<8x1xf32>
    %164 = vector.broadcast %163 : vector<8x1xf32> to vector<8x32xf32>
    %165 = arith.subf %157, %164 : vector<8x32xf32>
    %166 = arith.mulf %165, %165 : vector<8x32xf32>
    %cst_73 = arith.constant dense<0.000000e+00> : vector<8xf32>
    %167 = vector.multi_reduction <add>, %166, %cst_73 [1] : vector<8x32xf32> to vector<8xf32>
    %168 = vector.shape_cast %167 : vector<8xf32> to vector<8x1xf32>
    %cst_74 = arith.constant 3.200000e+01 : f32
    %169 = vector.broadcast %cst_74 : f32 to vector<8x1xf32>
    %170 = arith.divf %168, %169 : vector<8x1xf32>
    %cst_75 = arith.constant 9.99999974E-6 : f32
    %171 = vector.broadcast %cst_75 : f32 to vector<8x1xf32>
    %172 = arith.addf %170, %171 : vector<8x1xf32>
    %173 = math.rsqrt %172 : vector<8x1xf32>
    %174 = vector.broadcast %173 : vector<8x1xf32> to vector<8x32xf32>
    %175 = arith.mulf %165, %174 : vector<8x32xf32>
    %176 = vector.broadcast %158 : vector<1x32xf32> to vector<8x32xf32>
    %177 = arith.mulf %175, %176 : vector<8x32xf32>
    %178 = vector.broadcast %159 : vector<1x32xf32> to vector<8x32xf32>
    %179 = arith.addf %177, %178 : vector<8x32xf32>
    %c0_76 = arith.constant 0 : index
    %c0_77 = arith.constant 0 : index
    %c0_78 = arith.constant 0 : index
    %180 = vector.load %arg18[%c0_76, %c0_77, %c0_78] : memref<1x8x32xf32, #tpu.memory_space<vmem>>, vector<1x8x32xf32>
    %181 = vector.shape_cast %180 : vector<1x8x32xf32> to vector<8x32xf32>
    %182 = vector.shape_cast %179 : vector<8x32xf32> to vector<1x8x32xf32>
    tpu.vector_store %arg18[%c0_76, %c0_77, %c0_78], %182 {strides = array<i32>} : memref<1x8x32xf32, #tpu.memory_space<vmem>>, vector<1x8x32xf32>,
    return
  }
  func.func @transform_0(%arg0: i32) -> (i32, i32, i32) {
    %c0_i32 = arith.constant 0 : i32
    %c0_i32_0 = arith.constant 0 : i32
    %c0_i32_1 = arith.constant 0 : i32
    return %arg0, %c0_i32, %c0_i32_0 : i32, i32, i32
  }
  func.func @transform_1(%arg0: i32) -> (i32, i32) {
    %c0_i32 = arith.constant 0 : i32
    %c0_i32_0 = arith.constant 0 : i32
    %c0_i32_1 = arith.constant 0 : i32
    return %c0_i32, %c0_i32_0 : i32, i32
  }
  func.func @transform_2(%arg0: i32) -> (i32, i32) {
    %c0_i32 = arith.constant 0 : i32
    %c0_i32_0 = arith.constant 0 : i32
    %c0_i32_1 = arith.constant 0 : i32
    return %c0_i32, %c0_i32_0 : i32, i32
  }
  func.func @transform_3(%arg0: i32) -> (i32, i32) {
    %c0_i32 = arith.constant 0 : i32
    %c0_i32_0 = arith.constant 0 : i32
    %c0_i32_1 = arith.constant 0 : i32
    return %c0_i32, %c0_i32_0 : i32, i32
  }
  func.func @transform_4(%arg0: i32) -> (i32, i32) {
    %c0_i32 = arith.constant 0 : i32
    %c0_i32_0 = arith.constant 0 : i32
    %c0_i32_1 = arith.constant 0 : i32
    return %c0_i32, %c0_i32_0 : i32, i32
  }
  func.func @transform_5(%arg0: i32) -> (i32, i32) {
    %c0_i32 = arith.constant 0 : i32
    %c0_i32_0 = arith.constant 0 : i32
    %c0_i32_1 = arith.constant 0 : i32
    return %c0_i32, %c0_i32_0 : i32, i32
  }
  func.func @transform_6(%arg0: i32) -> (i32, i32) {
    %c0_i32 = arith.constant 0 : i32
    %c0_i32_0 = arith.constant 0 : i32
    %c0_i32_1 = arith.constant 0 : i32
    return %c0_i32, %c0_i32_0 : i32, i32
  }
  func.func @transform_7(%arg0: i32) -> (i32, i32) {
    %c0_i32 = arith.constant 0 : i32
    %c0_i32_0 = arith.constant 0 : i32
    %c0_i32_1 = arith.constant 0 : i32
    return %c0_i32, %c0_i32_0 : i32, i32
  }
  func.func @transform_8(%arg0: i32) -> (i32, i32) {
    %c0_i32 = arith.constant 0 : i32
    %c0_i32_0 = arith.constant 0 : i32
    %c0_i32_1 = arith.constant 0 : i32
    return %c0_i32, %c0_i32_0 : i32, i32
  }
  func.func @transform_9(%arg0: i32) -> (i32, i32) {
    %c0_i32 = arith.constant 0 : i32
    %c0_i32_0 = arith.constant 0 : i32
    %c0_i32_1 = arith.constant 0 : i32
    return %c0_i32, %c0_i32_0 : i32, i32
  }
  func.func @transform_10(%arg0: i32) -> (i32, i32) {
    %c0_i32 = arith.constant 0 : i32
    %c0_i32_0 = arith.constant 0 : i32
    %c0_i32_1 = arith.constant 0 : i32
    return %c0_i32, %c0_i32_0 : i32, i32
  }
  func.func @transform_11(%arg0: i32) -> (i32, i32) {
    %c0_i32 = arith.constant 0 : i32
    %c0_i32_0 = arith.constant 0 : i32
    %c0_i32_1 = arith.constant 0 : i32
    return %c0_i32, %c0_i32_0 : i32, i32
  }
  func.func @transform_12(%arg0: i32) -> (i32, i32) {
    %c0_i32 = arith.constant 0 : i32
    %c0_i32_0 = arith.constant 0 : i32
    %c0_i32_1 = arith.constant 0 : i32
    return %c0_i32, %c0_i32_0 : i32, i32
  }
  func.func @transform_13(%arg0: i32) -> (i32, i32) {
    %c0_i32 = arith.constant 0 : i32
    %c0_i32_0 = arith.constant 0 : i32
    %c0_i32_1 = arith.constant 0 : i32
    return %c0_i32, %c0_i32_0 : i32, i32
  }
  func.func @transform_14(%arg0: i32) -> (i32, i32) {
    %c0_i32 = arith.constant 0 : i32
    %c0_i32_0 = arith.constant 0 : i32
    %c0_i32_1 = arith.constant 0 : i32
    return %c0_i32, %c0_i32_0 : i32, i32
  }
  func.func @transform_15(%arg0: i32) -> (i32, i32) {
    %c0_i32 = arith.constant 0 : i32
    %c0_i32_0 = arith.constant 0 : i32
    %c0_i32_1 = arith.constant 0 : i32
    return %c0_i32, %c0_i32_0 : i32, i32
  }
  func.func @transform_16(%arg0: i32) -> (i32, i32) {
    %c0_i32 = arith.constant 0 : i32
    %c0_i32_0 = arith.constant 0 : i32
    %c0_i32_1 = arith.constant 0 : i32
    return %c0_i32, %c0_i32_0 : i32, i32
  }
  func.func @transform_17(%arg0: i32) -> (i32, i32, i32) {
    %c0_i32 = arith.constant 0 : i32
    %c0_i32_0 = arith.constant 0 : i32
    %c0_i32_1 = arith.constant 0 : i32
    return %arg0, %c0_i32, %c0_i32_0 : i32, i32, i32
  }
}

</mosaic_0001>

<llo_original>
// kernel: tpu_custom_call.1
$region0: #{tpu_custom_call.1}
  #allocation0 [shape = 'u32[]', space=smem, size = 0x4, offset = 0x4, fixed_abs, tag = 'smem constant byte address 0x4 - core index']
  #allocation1 [shape = 'u32[72,128]{1,0:T(1,128)}', space=vmem, size = 0x9000, scoped, tag = 'internal scratch']
  #allocation2 [shape = 'bf16[8,32]{1,0:T(8,128)(2,1)}', space=vmem, size = 0x800, scoped, tag = 'scratch operand']
  %s0 = inlined_call_operand.vmem [shape: f32[2,8,32], index: 0, kind: input, shape index: {}]
  %s1 = inlined_call_operand.vmem [shape: bf16[32,32], index: 1, kind: input, shape index: {}]
  %s2 = inlined_call_operand.vmem [shape: bf16[32,32], index: 2, kind: input, shape index: {}]
  %s3 = inlined_call_operand.hbm [shape: bf16[32,32], index: 3, kind: input, shape index: {}]
  %s4 = inlined_call_operand.hbm [shape: bf16[32,32], index: 4, kind: input, shape index: {}]
  %s5 = inlined_call_operand.vmem [shape: f32[1,32], index: 5, kind: input, shape index: {}]
  %s6 = inlined_call_operand.vmem [shape: f32[1,32], index: 6, kind: input, shape index: {}]
  %s7 = inlined_call_operand.vmem [shape: f32[1,32], index: 7, kind: input, shape index: {}]
  %s8 = inlined_call_operand.vmem [shape: f32[1,32], index: 8, kind: input, shape index: {}]
  %s9 = inlined_call_operand.vmem [shape: f32[1,32], index: 9, kind: input, shape index: {}]
  %s10 = inlined_call_operand.vmem [shape: f32[1,32], index: 10, kind: input, shape index: {}]
  %s11 = inlined_call_operand.vmem [shape: f32[1,32], index: 11, kind: input, shape index: {}]
  %s12 = inlined_call_operand.vmem [shape: f32[1,32], index: 12, kind: input, shape index: {}]
  %s13 = inlined_call_operand.hbm [shape: bf16[32,64], index: 13, kind: input, shape index: {}]
  %s14 = inlined_call_operand.vmem [shape: f32[1,64], index: 14, kind: input, shape index: {}]
  %s15 = inlined_call_operand.vmem [shape: bf16[64,32], index: 15, kind: input, shape index: {}]
  %s16 = inlined_call_operand.vmem [shape: f32[1,32], index: 16, kind: input, shape index: {}]
  %s17 = inlined_call_operand.hbm [shape: f32[2,8,32], index: 17, kind: output, shape index: {}]
  %s18 = sld [smem:[#allocation0]]
  $region113: #{tpu_custom_call.1} parent=0
    _
  %s20 = ssub.s32 1, %s18
  %s21 = scalar_select 0, %s20, %s18
  $region1: #{tpu_custom_call.1} parent=0
    #allocation3 [shape = 'u8[8192]{0}', space=vmem, size = 0x2000, scoped, tag = 'input window, operand 3, single buffered']
    #allocation4 [shape = 's32[2]{0}', space=sflag, size = 0x8, scoped, tag = 'scoped memory for tpu_custom_call.1']
    #allocation5 [shape = 's32[2]{0}', space=sflag, size = 0x8, scoped, tag = 'scoped memory for tpu_custom_call.1']
    #allocation6 [shape = 'u8[8192]{0}', space=vmem, size = 0x2000, scoped, tag = 'input window, operand 4, single buffered']
    #allocation7 [shape = 's32[1]{0}', space=sflag, size = 0x4, scoped, tag = 'scoped memory for tpu_custom_call.1']
    #allocation8 [shape = 'u8[8192]{0}', space=vmem, size = 0x2000, scoped, tag = 'input window, operand 13, single buffered']
    #allocation9 [shape = 'u8[8192]{0}', space=vmem, size = 0x2000, scoped, tag = 'output window, operand 0']
    %22 = vsyncpa [#allocation4], 0
    %23 = vsyncpa [#allocation7], 0
    %24 = vsyncpa [#allocation5], 0
    %s25 = scalar_lea.sflag [#allocation5], 1
    %26 = vsyncpa %s25, 0
    loop: start=0, step=1, limit=4
    $region2: #{tpu_custom_call.1} parent=1 // loop_pre_header
      _
    $region3: #{tpu_custom_call.1} parent=1 // loop_header
      %s28 = sphi 0, %s32
      %p29 = scmp.ge.s32.totalorder %s28, 4
      %s38 = sphi 0, %s40
      %s41 = sphi 0, %s38
      %s42 = sphi 0, %s41
      %s58 = sphi 0, %s42
      %s62 = sphi 0, %s62
      %s64 = sphi 0, %s62
      %s65 = sphi 0, %s64
      %s79 = sphi 0, %s65
      %s83 = sphi 0, %s83
      %s85 = sphi 0, %s83
      %s86 = sphi 0, %s85
      %s100 = sphi 0, %s86
      %s104 = sphi 0, %s104
      %s106 = sphi 0, %s104
      %s107 = sphi 0, %s106
      %s121 = sphi 0, %s107
      %s125 = sphi 0, %s125
      %s127 = sphi 0, %s125
      %s128 = sphi 0, %s127
      %s142 = sphi 0, %s128
      %s146 = sphi 0, %s146
      %s148 = sphi 0, %s146
      %s149 = sphi 0, %s148
      %s163 = sphi 0, %s149
      %s167 = sphi 0, %s167
      %s169 = sphi 0, %s167
      %s170 = sphi 0, %s169
      %s184 = sphi 0, %s170
      %s188 = sphi 0, %s188
      %s190 = sphi 0, %s188
      %s191 = sphi 0, %s190
      %s205 = sphi 0, %s191
      %s209 = sphi 0, %s209
      %s211 = sphi 0, %s209
      %s212 = sphi 0, %s211
      %s226 = sphi 0, %s212
      %s230 = sphi 0, %s230
      %s232 = sphi 0, %s230
      %s233 = sphi 0, %s232
      %s247 = sphi 0, %s233
      %s251 = sphi 0, %s251
      %s253 = sphi 0, %s251
      %s254 = sphi 0, %s253
      %s268 = sphi 0, %s254
      %s272 = sphi 0, %s272
      %s274 = sphi 0, %s272
      %s275 = sphi 0, %s274
      %s289 = sphi 0, %s275
      %s293 = sphi 0, %s293
      %s295 = sphi 0, %s293
      %s296 = sphi 0, %s295
      %s310 = sphi 0, %s296
      %s314 = sphi 0, %s314
      %s316 = sphi 0, %s314
      %s317 = sphi 0, %s316
      %s331 = sphi 0, %s317
      %s335 = sphi 0, %s335
      %s337 = sphi 0, %s335
      %s338 = sphi 0, %s337
      %s352 = sphi 0, %s338
      %s356 = sphi 0, %s356
      %s358 = sphi 0, %s356
      %s359 = sphi 0, %s358
      %s373 = sphi 0, %s359
      %s377 = sphi 0, %s377
      %s379 = sphi 0, %s377
      %s380 = sphi 0, %s379
      %s394 = sphi 0, %s380
      %s400 = sphi 0, %s402
      %s403 = sphi 0, %s400
      %s404 = sphi 0, %s403
      %s420 = sphi 0, %s404
    $region4: #{tpu_custom_call.1} parent=1 // loop_header_branch
      %31 = sbr.rel (%p29) target = $region8
    $region5: #{tpu_custom_call.1} parent=1 // loop_body
      %s33 = ssub.s32 %s28, 1
      %s34 = ssub.s32 %s28, 2
      %s35 = sadd.s32 %s28, 1
      %s36 = ssub.s32 %s28, %s35
      %p37 = scmp.eq.s32.totalorder %s36, 0
      %s39 = sadd.s32 %s38, 1
      %s40 = scalar_select %p37, %s38, %s39
      %p43 = pneg %p37
      %p44 = scmp.eq.s32.totalorder %s28, 1
      %p45 = por %p43, %p44
      %p46 = scmp.ne.s32.totalorder %s38, %s41
      %p47 = scmp.eq.s32.totalorder %s28, 0
      %p48 = por %p46, %p47
      %p49 = scmp.ne.s32.totalorder %s38, %s41
      %p50 = scmp.eq.s32.totalorder %s33, 1
      %p51 = por %p49, %p50
      %p52 = scmp.ne.s32.totalorder %s41, %s42
      %p53 = scmp.eq.s32.totalorder %s33, 0
      %p54 = por %p52, %p53
      %p55 = scmp.ne.s32.totalorder %s41, %s42
      %p56 = scmp.eq.s32.totalorder %s34, 1
      %p57 = por %p55, %p56
      %p59 = scmp.ne.s32.totalorder %s42, %s58
      %p60 = scmp.eq.s32.totalorder %s34, 0
      %p61 = por %p59, %p60
      %s63 = sadd.s32 %s62, 1
      %p66 = scmp.eq.s32.totalorder %s28, 1
      %p67 = scmp.ne.s32.totalorder %s62, %s64
      %p68 = scmp.eq.s32.totalorder %s28, 0
      %p69 = por %p67, %p68
      %p70 = scmp.ne.s32.totalorder %s62, %s64
      %p71 = scmp.eq.s32.totalorder %s33, 1
      %p72 = por %p70, %p71
      %p73 = scmp.ne.s32.totalorder %s64, %s65
      %p74 = scmp.eq.s32.totalorder %s33, 0
      %p75 = por %p73, %p74
      %p76 = scmp.ne.s32.totalorder %s64, %s65
      %p77 = scmp.eq.s32.totalorder %s34, 1
      %p78 = por %p76, %p77
      %p80 = scmp.ne.s32.totalorder %s65, %s79
      %p81 = scmp.eq.s32.totalorder %s34, 0
      %p82 = por %p80, %p81
      %s84 = sadd.s32 %s83, 1
      %p87 = scmp.eq.s32.totalorder %s28, 1
      %p88 = scmp.ne.s32.totalorder %s83, %s85
      %p89 = scmp.eq.s32.totalorder %s28, 0
      %p90 = por %p88, %p89
      %p91 = scmp.ne.s32.totalorder %s83, %s85
      %p92 = scmp.eq.s32.totalorder %s33, 1
      %p93 = por %p91, %p92
      %p94 = scmp.ne.s32.totalorder %s85, %s86
      %p95 = scmp.eq.s32.totalorder %s33, 0
      %p96 = por %p94, %p95
      %p97 = scmp.ne.s32.totalorder %s85, %s86
      %p98 = scmp.eq.s32.totalorder %s34, 1
      %p99 = por %p97, %p98
      %p101 = scmp.ne.s32.totalorder %s86, %s100
      %p102 = scmp.eq.s32.totalorder %s34, 0
      %p103 = por %p101, %p102
      %s105 = sadd.s32 %s104, 1
      %p108 = scmp.eq.s32.totalorder %s28, 1
      %p109 = scmp.ne.s32.totalorder %s104, %s106
      %p110 = scmp.eq.s32.totalorder %s28, 0
      %p111 = por %p109, %p110
      %p112 = scmp.ne.s32.totalorder %s104, %s106
      %p113 = scmp.eq.s32.totalorder %s33, 1
      %p114 = por %p112, %p113
      %p115 = scmp.ne.s32.totalorder %s106, %s107
      %p116 = scmp.eq.s32.totalorder %s33, 0
      %p117 = por %p115, %p116
      %p118 = scmp.ne.s32.totalorder %s106, %s107
      %p119 = scmp.eq.s32.totalorder %s34, 1
      %p120 = por %p118, %p119
      %p122 = scmp.ne.s32.totalorder %s107, %s121
      %p123 = scmp.eq.s32.totalorder %s34, 0
      %p124 = por %p122, %p123
      %s126 = sadd.s32 %s125, 1
      %p129 = scmp.eq.s32.totalorder %s28, 1
      %p130 = scmp.ne.s32.totalorder %s125, %s127
      %p131 = scmp.eq.s32.totalorder %s28, 0
      %p132 = por %p130, %p131
      %p133 = scmp.ne.s32.totalorder %s125, %s127
      %p134 = scmp.eq.s32.totalorder %s33, 1
      %p135 = por %p133, %p134
      %p136 = scmp.ne.s32.totalorder %s127, %s128
      %p137 = scmp.eq.s32.totalorder %s33, 0
      %p138 = por %p136, %p137
      %p139 = scmp.ne.s32.totalorder %s127, %s128
      %p140 = scmp.eq.s32.totalorder %s34, 1
      %p141 = por %p139, %p140
      %p143 = scmp.ne.s32.totalorder %s128, %s142
      %p144 = scmp.eq.s32.totalorder %s34, 0
      %p145 = por %p143, %p144
      %s147 = sadd.s32 %s146, 1
      %p150 = scmp.eq.s32.totalorder %s28, 1
      %p151 = scmp.ne.s32.totalorder %s146, %s148
      %p152 = scmp.eq.s32.totalorder %s28, 0
      %p153 = por %p151, %p152
      %p154 = scmp.ne.s32.totalorder %s146, %s148
      %p155 = scmp.eq.s32.totalorder %s33, 1
      %p156 = por %p154, %p155
      %p157 = scmp.ne.s32.totalorder %s148, %s149
      %p158 = scmp.eq.s32.totalorder %s33, 0
      %p159 = por %p157, %p158
      %p160 = scmp.ne.s32.totalorder %s148, %s149
      %p161 = scmp.eq.s32.totalorder %s34, 1
      %p162 = por %p160, %p161
      %p164 = scmp.ne.s32.totalorder %s149, %s163
      %p165 = scmp.eq.s32.totalorder %s34, 0
      %p166 = por %p164, %p165
      %s168 = sadd.s32 %s167, 1
      %p171 = scmp.eq.s32.totalorder %s28, 1
      %p172 = scmp.ne.s32.totalorder %s167, %s169
      %p173 = scmp.eq.s32.totalorder %s28, 0
      %p174 = por %p172, %p173
      %p175 = scmp.ne.s32.totalorder %s167, %s169
      %p176 = scmp.eq.s32.totalorder %s33, 1
      %p177 = por %p175, %p176
      %p178 = scmp.ne.s32.totalorder %s169, %s170
      %p179 = scmp.eq.s32.totalorder %s33, 0
      %p180 = por %p178, %p179
      %p181 = scmp.ne.s32.totalorder %s169, %s170
      %p182 = scmp.eq.s32.totalorder %s34, 1
      %p183 = por %p181, %p182
      %p185 = scmp.ne.s32.totalorder %s170, %s184
      %p186 = scmp.eq.s32.totalorder %s34, 0
      %p187 = por %p185, %p186
      %s189 = sadd.s32 %s188, 1
      %p192 = scmp.eq.s32.totalorder %s28, 1
      %p193 = scmp.ne.s32.totalorder %s188, %s190
      %p194 = scmp.eq.s32.totalorder %s28, 0
      %p195 = por %p193, %p194
      %p196 = scmp.ne.s32.totalorder %s188, %s190
      %p197 = scmp.eq.s32.totalorder %s33, 1
      %p198 = por %p196, %p197
      %p199 = scmp.ne.s32.totalorder %s190, %s191
      %p200 = scmp.eq.s32.totalorder %s33, 0
      %p201 = por %p199, %p200
      %p202 = scmp.ne.s32.totalorder %s190, %s191
      %p203 = scmp.eq.s32.totalorder %s34, 1
      %p204 = por %p202, %p203
      %p206 = scmp.ne.s32.totalorder %s191, %s205
      %p207 = scmp.eq.s32.totalorder %s34, 0
      %p208 = por %p206, %p207
      %s210 = sadd.s32 %s209, 1
      %p213 = scmp.eq.s32.totalorder %s28, 1
      %p214 = scmp.ne.s32.totalorder %s209, %s211
      %p215 = scmp.eq.s32.totalorder %s28, 0
      %p216 = por %p214, %p215
      %p217 = scmp.ne.s32.totalorder %s209, %s211
      %p218 = scmp.eq.s32.totalorder %s33, 1
      %p219 = por %p217, %p218
      %p220 = scmp.ne.s32.totalorder %s211, %s212
      %p221 = scmp.eq.s32.totalorder %s33, 0
      %p222 = por %p220, %p221
      %p223 = scmp.ne.s32.totalorder %s211, %s212
      %p224 = scmp.eq.s32.totalorder %s34, 1
      %p225 = por %p223, %p224
      %p227 = scmp.ne.s32.totalorder %s212, %s226
      %p228 = scmp.eq.s32.totalorder %s34, 0
      %p229 = por %p227, %p228
      %s231 = sadd.s32 %s230, 1
      %p234 = scmp.eq.s32.totalorder %s28, 1
      %p235 = scmp.ne.s32.totalorder %s230, %s232
      %p236 = scmp.eq.s32.totalorder %s28, 0
      %p237 = por %p235, %p236
      %p238 = scmp.ne.s32.totalorder %s230, %s232
      %p239 = scmp.eq.s32.totalorder %s33, 1
      %p240 = por %p238, %p239
      %p241 = scmp.ne.s32.totalorder %s232, %s233
      %p242 = scmp.eq.s32.totalorder %s33, 0
      %p243 = por %p241, %p242
      %p244 = scmp.ne.s32.totalorder %s232, %s233
      %p245 = scmp.eq.s32.totalorder %s34, 1
      %p246 = por %p244, %p245
      %p248 = scmp.ne.s32.totalorder %s233, %s247
      %p249 = scmp.eq.s32.totalorder %s34, 0
      %p250 = por %p248, %p249
      %s252 = sadd.s32 %s251, 1
      %p255 = scmp.eq.s32.totalorder %s28, 1
      %p256 = scmp.ne.s32.totalorder %s251, %s253
      %p257 = scmp.eq.s32.totalorder %s28, 0
      %p258 = por %p256, %p257
      %p259 = scmp.ne.s32.totalorder %s251, %s253
      %p260 = scmp.eq.s32.totalorder %s33, 1
      %p261 = por %p259, %p260
      %p262 = scmp.ne.s32.totalorder %s253, %s254
      %p263 = scmp.eq.s32.totalorder %s33, 0
      %p264 = por %p262, %p263
      %p265 = scmp.ne.s32.totalorder %s253, %s254
      %p266 = scmp.eq.s32.totalorder %s34, 1
      %p267 = por %p265, %p266
      %p269 = scmp.ne.s32.totalorder %s254, %s268
      %p270 = scmp.eq.s32.totalorder %s34, 0
      %p271 = por %p269, %p270
      %s273 = sadd.s32 %s272, 1
      %p276 = scmp.eq.s32.totalorder %s28, 1
      %p277 = scmp.ne.s32.totalorder %s272, %s274
      %p278 = scmp.eq.s32.totalorder %s28, 0
      %p279 = por %p277, %p278
      %p280 = scmp.ne.s32.totalorder %s272, %s274
      %p281 = scmp.eq.s32.totalorder %s33, 1
      %p282 = por %p280, %p281
      %p283 = scmp.ne.s32.totalorder %s274, %s275
      %p284 = scmp.eq.s32.totalorder %s33, 0
      %p285 = por %p283, %p284
      %p286 = scmp.ne.s32.totalorder %s274, %s275
      %p287 = scmp.eq.s32.totalorder %s34, 1
      %p288 = por %p286, %p287
      %p290 = scmp.ne.s32.totalorder %s275, %s289
      %p291 = scmp.eq.s32.totalorder %s34, 0
      %p292 = por %p290, %p291
      %s294 = sadd.s32 %s293, 1
      %p297 = scmp.eq.s32.totalorder %s28, 1
      %p298 = scmp.ne.s32.totalorder %s293, %s295
      %p299 = scmp.eq.s32.totalorder %s28, 0
      %p300 = por %p298, %p299
      %p301 = scmp.ne.s32.totalorder %s293, %s295
      %p302 = scmp.eq.s32.totalorder %s33, 1
      %p303 = por %p301, %p302
      %p304 = scmp.ne.s32.totalorder %s295, %s296
      %p305 = scmp.eq.s32.totalorder %s33, 0
      %p306 = por %p304, %p305
      %p307 = scmp.ne.s32.totalorder %s295, %s296
      %p308 = scmp.eq.s32.totalorder %s34, 1
      %p309 = por %p307, %p308
      %p311 = scmp.ne.s32.totalorder %s296, %s310
      %p312 = scmp.eq.s32.totalorder %s34, 0
      %p313 = por %p311, %p312
      %s315 = sadd.s32 %s314, 1
      %p318 = scmp.eq.s32.totalorder %s28, 1
      %p319 = scmp.ne.s32.totalorder %s314, %s316
      %p320 = scmp.eq.s32.totalorder %s28, 0
      %p321 = por %p319, %p320
      %p322 = scmp.ne.s32.totalorder %s314, %s316
      %p323 = scmp.eq.s32.totalorder %s33, 1
      %p324 = por %p322, %p323
      %p325 = scmp.ne.s32.totalorder %s316, %s317
      %p326 = scmp.eq.s32.totalorder %s33, 0
      %p327 = por %p325, %p326
      %p328 = scmp.ne.s32.totalorder %s316, %s317
      %p329 = scmp.eq.s32.totalorder %s34, 1
      %p330 = por %p328, %p329
      %p332 = scmp.ne.s32.totalorder %s317, %s331
      %p333 = scmp.eq.s32.totalorder %s34, 0
      %p334 = por %p332, %p333
      %s336 = sadd.s32 %s335, 1
      %p339 = scmp.eq.s32.totalorder %s28, 1
      %p340 = scmp.ne.s32.totalorder %s335, %s337
      %p341 = scmp.eq.s32.totalorder %s28, 0
      %p342 = por %p340, %p341
      %p343 = scmp.ne.s32.totalorder %s335, %s337
      %p344 = scmp.eq.s32.totalorder %s33, 1
      %p345 = por %p343, %p344
      %p346 = scmp.ne.s32.totalorder %s337, %s338
      %p347 = scmp.eq.s32.totalorder %s33, 0
      %p348 = por %p346, %p347
      %p349 = scmp.ne.s32.totalorder %s337, %s338
      %p350 = scmp.eq.s32.totalorder %s34, 1
      %p351 = por %p349, %p350
      %p353 = scmp.ne.s32.totalorder %s338, %s352
      %p354 = scmp.eq.s32.totalorder %s34, 0
      %p355 = por %p353, %p354
      %s357 = sadd.s32 %s356, 1
      %p360 = scmp.eq.s32.totalorder %s28, 1
      %p361 = scmp.ne.s32.totalorder %s356, %s358
      %p362 = scmp.eq.s32.totalorder %s28, 0
      %p363 = por %p361, %p362
      %p364 = scmp.ne.s32.totalorder %s356, %s358
      %p365 = scmp.eq.s32.totalorder %s33, 1
      %p366 = por %p364, %p365
      %p367 = scmp.ne.s32.totalorder %s358, %s359
      %p368 = scmp.eq.s32.totalorder %s33, 0
      %p369 = por %p367, %p368
      %p370 = scmp.ne.s32.totalorder %s358, %s359
      %p371 = scmp.eq.s32.totalorder %s34, 1
      %p372 = por %p370, %p371
      %p374 = scmp.ne.s32.totalorder %s359, %s373
      %p375 = scmp.eq.s32.totalorder %s34, 0
      %p376 = por %p374, %p375
      %s378 = sadd.s32 %s377, 1
      %p381 = scmp.eq.s32.totalorder %s28, 1
      %p382 = scmp.ne.s32.totalorder %s377, %s379
      %p383 = scmp.eq.s32.totalorder %s28, 0
      %p384 = por %p382, %p383
      %p385 = scmp.ne.s32.totalorder %s377, %s379
      %p386 = scmp.eq.s32.totalorder %s33, 1
      %p387 = por %p385, %p386
      %p388 = scmp.ne.s32.totalorder %s379, %s380
      %p389 = scmp.eq.s32.totalorder %s33, 0
      %p390 = por %p388, %p389
      %p391 = scmp.ne.s32.totalorder %s379, %s380
      %p392 = scmp.eq.s32.totalorder %s34, 1
      %p393 = por %p391, %p392
      %p395 = scmp.ne.s32.totalorder %s380, %s394
      %p396 = scmp.eq.s32.totalorder %s34, 0
      %p397 = por %p395, %p396
      %s398 = ssub.s32 %s28, %s35
      %p399 = scmp.eq.s32.totalorder %s398, 0
      %s401 = sadd.s32 %s400, 1
      %s402 = scalar_select %p399, %s400, %s401
      %p405 = pneg %p399
      %p406 = scmp.eq.s32.totalorder %s28, 1
      %p407 = por %p405, %p406
      %p408 = scmp.ne.s32.totalorder %s400, %s403
      %p409 = scmp.eq.s32.totalorder %s28, 0
      %p410 = por %p408, %p409
      %p411 = scmp.ne.s32.totalorder %s400, %s403
      %p412 = scmp.eq.s32.totalorder %s33, 1
      %p413 = por %p411, %p412
      %p414 = scmp.ne.s32.totalorder %s403, %s404
      %p415 = scmp.eq.s32.totalorder %s33, 0
      %p416 = por %p414, %p415
      %p417 = scmp.ne.s32.totalorder %s403, %s404
      %p418 = scmp.eq.s32.totalorder %s34, 1
      %p419 = por %p417, %p418
      %p421 = scmp.ne.s32.totalorder %s404, %s420
      %p422 = scmp.eq.s32.totalorder %s34, 0
      %p423 = por %p421, %p422
      %p424 = scmp.le.s32.totalorder 1, %s28
      %p425 = scmp.lt.s32.totalorder %s28, 3
      %p426 = pnand %p424, %p425
      %p427 = pneg %p426
      // Predicated region
      $region9: #{tpu_custom_call.1} parent=5 // pred_check
        _
      $region10: #{tpu_custom_call.1} parent=5 // pred_check_branch
        %429 = sbr.rel (%p426) target = $region12
      $region11: #{tpu_custom_call.1} parent=5 // pred_region
        %s430 = ssub.s32 %s28, 1
        // Predicated region
        $region13: #{tpu_custom_call.1} parent=11 // pred_check
          %p431 = pneg %p75
        $region14: #{tpu_custom_call.1} parent=11 // pred_check_branch
          %433 = sbr.rel (%p431) target = $region16
        $region15: #{tpu_custom_call.1} parent=11 // pred_region
          _
        $region16: #{tpu_custom_call.1} parent=11 // pred_fallthru
          _
        // Predicated region
        $region17: #{tpu_custom_call.1} parent=11 // pred_check
          %p434 = pneg %p96
        $region18: #{tpu_custom_call.1} parent=11 // pred_check_branch
          %436 = sbr.rel (%p434) target = $region20
        $region19: #{tpu_custom_call.1} parent=11 // pred_region
          _
        $region20: #{tpu_custom_call.1} parent=11 // pred_fallthru
          _
        // Predicated region
        $region21: #{tpu_custom_call.1} parent=11 // pred_check
          %p437 = pneg %p117
        $region22: #{tpu_custom_call.1} parent=11 // pred_check_branch
          %439 = sbr.rel (%p437) target = $region24
        $region23: #{tpu_custom_call.1} parent=11 // pred_region
          %441 = vsyncadd [#allocation4], 0
          %s442 = sshll.u32 %s3, 4
          %s443 = int_to_ptr.hbm [resolvable:$true] %s442
          %s444 = sshll.u32 [#allocation3], 4
          %s445 = int_to_ptr.vmem [resolvable:$true] %s444
          %450 = dma.hbm_to_vmem [thread:$0]  %s443, 256, %s445, [#allocation4], 64, 64, 4
        $region24: #{tpu_custom_call.1} parent=11 // pred_fallthru
          _
        // Predicated region
        $region25: #{tpu_custom_call.1} parent=11 // pred_check
          %p451 = pneg %p138
        $region26: #{tpu_custom_call.1} parent=11 // pred_check_branch
          %453 = sbr.rel (%p451) target = $region28
        $region27: #{tpu_custom_call.1} parent=11 // pred_region
          %455 = vsyncadd [#allocation7], 0
          %s456 = sshll.u32 %s4, 4
          %s457 = int_to_ptr.hbm [resolvable:$true] %s456
          %s458 = sshll.u32 [#allocation6], 4
          %s459 = int_to_ptr.vmem [resolvable:$true] %s458
          %464 = dma.hbm_to_vmem [thread:$0]  %s457, 256, %s459, [#allocation7], 64, 64, 4
        $region28: #{tpu_custom_call.1} parent=11 // pred_fallthru
          _
        // Predicated region
        $region29: #{tpu_custom_call.1} parent=11 // pred_check
          %p465 = pneg %p159
        $region30: #{tpu_custom_call.1} parent=11 // pred_check_branch
          %467 = sbr.rel (%p465) target = $region32
        $region31: #{tpu_custom_call.1} parent=11 // pred_region
          _
        $region32: #{tpu_custom_call.1} parent=11 // pred_fallthru
          _
        // Predicated region
        $region33: #{tpu_custom_call.1} parent=11 // pred_check
          %p468 = pneg %p180
        $region34: #{tpu_custom_call.1} parent=11 // pred_check_branch
          %470 = sbr.rel (%p468) target = $region36
        $region35: #{tpu_custom_call.1} parent=11 // pred_region
          _
        $region36: #{tpu_custom_call.1} parent=11 // pred_fallthru
          _
        // Predicated region
        $region37: #{tpu_custom_call.1} parent=11 // pred_check
          %p471 = pneg %p201
        $region38: #{tpu_custom_call.1} parent=11 // pred_check_branch
          %473 = sbr.rel (%p471) target = $region40
        $region39: #{tpu_custom_call.1} parent=11 // pred_region
          _
        $region40: #{tpu_custom_call.1} parent=11 // pred_fallthru
          _
        // Predicated region
        $region41: #{tpu_custom_call.1} parent=11 // pred_check
          %p474 = pneg %p222
        $region42: #{tpu_custom_call.1} parent=11 // pred_check_branch
          %476 = sbr.rel (%p474) target = $region44
        $region43: #{tpu_custom_call.1} parent=11 // pred_region
          _
        $region44: #{tpu_custom_call.1} parent=11 // pred_fallthru
          _
        // Predicated region
        $region45: #{tpu_custom_call.1} parent=11 // pred_check
          %p477 = pneg %p243
        $region46: #{tpu_custom_call.1} parent=11 // pred_check_branch
          %479 = sbr.rel (%p477) target = $region48
        $region47: #{tpu_custom_call.1} parent=11 // pred_region
          _
        $region48: #{tpu_custom_call.1} parent=11 // pred_fallthru
          _
        // Predicated region
        $region49: #{tpu_custom_call.1} parent=11 // pred_check
          %p480 = pneg %p264
        $region50: #{tpu_custom_call.1} parent=11 // pred_check_branch
          %482 = sbr.rel (%p480) target = $region52
        $region51: #{tpu_custom_call.1} parent=11 // pred_region
          _
        $region52: #{tpu_custom_call.1} parent=11 // pred_fallthru
          _
        // Predicated region
        $region53: #{tpu_custom_call.1} parent=11 // pred_check
          %p483 = pneg %p285
        $region54: #{tpu_custom_call.1} parent=11 // pred_check_branch
          %485 = sbr.rel (%p483) target = $region56
        $region55: #{tpu_custom_call.1} parent=11 // pred_region
          _
        $region56: #{tpu_custom_call.1} parent=11 // pred_fallthru
          _
        // Predicated region
        $region57: #{tpu_custom_call.1} parent=11 // pred_check
          %p486 = pneg %p306
        $region58: #{tpu_custom_call.1} parent=11 // pred_check_branch
          %488 = sbr.rel (%p486) target = $region60
        $region59: #{tpu_custom_call.1} parent=11 // pred_region
          _
        $region60: #{tpu_custom_call.1} parent=11 // pred_fallthru
          _
        // Predicated region
        $region61: #{tpu_custom_call.1} parent=11 // pred_check
          %p489 = pneg %p327
        $region62: #{tpu_custom_call.1} parent=11 // pred_check_branch
          %491 = sbr.rel (%p489) target = $region64
        $region63: #{tpu_custom_call.1} parent=11 // pred_region
          %493 = vsyncadd [#allocation7], 0
          %s494 = sshll.u32 %s13, 4
          %s495 = int_to_ptr.hbm [resolvable:$true] %s494
          %s496 = sshll.u32 [#allocation8], 4
          %s497 = int_to_ptr.vmem [resolvable:$true] %s496
          %502 = dma.hbm_to_vmem [thread:$0]  %s495, 256, %s497, [#allocation7], 64, 64, 4
        $region64: #{tpu_custom_call.1} parent=11 // pred_fallthru
          _
        // Predicated region
        $region65: #{tpu_custom_call.1} parent=11 // pred_check
          %p503 = pneg %p348
        $region66: #{tpu_custom_call.1} parent=11 // pred_check_branch
          %505 = sbr.rel (%p503) target = $region68
        $region67: #{tpu_custom_call.1} parent=11 // pred_region
          _
        $region68: #{tpu_custom_call.1} parent=11 // pred_fallthru
          _
        // Predicated region
        $region69: #{tpu_custom_call.1} parent=11 // pred_check
          %p506 = pneg %p369
        $region70: #{tpu_custom_call.1} parent=11 // pred_check_branch
          %508 = sbr.rel (%p506) target = $region72
        $region71: #{tpu_custom_call.1} parent=11 // pred_region
          _
        $region72: #{tpu_custom_call.1} parent=11 // pred_fallthru
          _
        // Predicated region
        $region73: #{tpu_custom_call.1} parent=11 // pred_check
          %p509 = pneg %p390
        $region74: #{tpu_custom_call.1} parent=11 // pred_check_branch
          %511 = sbr.rel (%p509) target = $region76
        $region75: #{tpu_custom_call.1} parent=11 // pred_region
          _
        $region76: #{tpu_custom_call.1} parent=11 // pred_fallthru
          _
      $region12: #{tpu_custom_call.1} parent=5 // pred_fallthru
        _
      %p512 = scmp.lt.s32.totalorder %s28, 2
      // Predicated region
      $region77: #{tpu_custom_call.1} parent=5 // pred_check
        %p513 = pneg %p512
      $region78: #{tpu_custom_call.1} parent=5 // pred_check_branch
        %515 = sbr.rel (%p513) target = $region80
      $region79: #{tpu_custom_call.1} parent=5 // pred_region
        // Predicated region
        $region81: #{tpu_custom_call.1} parent=79 // pred_check
          %p516 = pneg %p48
        $region82: #{tpu_custom_call.1} parent=79 // pred_check_branch
          %518 = sbr.rel (%p516) target = $region84
        $region83: #{tpu_custom_call.1} parent=79 // pred_region
          %p519 = scmp.lt.s32.totalorder %s28, 1
          %s520 = scalar_select %p519, %s28, 1
          %s521 = smul.addr %s520, 8
          %s522 = scalar_lea.vmem %s0, %s521
        $region84: #{tpu_custom_call.1} parent=79 // pred_fallthru
          _
      $region80: #{tpu_custom_call.1} parent=5 // pred_fallthru
        _
      %p523 = scmp.le.s32.totalorder 1, %s28
      %p524 = scmp.lt.s32.totalorder %s28, 3
      %p525 = pnand %p523, %p524
      %p526 = pneg %p525
      // Predicated region
      $region85: #{tpu_custom_call.1} parent=5 // pred_check
        _
      $region86: #{tpu_custom_call.1} parent=5 // pred_check_branch
        %528 = sbr.rel (%p525) target = $region88
      $region87: #{tpu_custom_call.1} parent=5 // pred_region
        %s529 = ssub.s32 %s28, 1
        // Predicated region
        $region89: #{tpu_custom_call.1} parent=87 // pred_check
          %p530 = pneg %p117
        $region90: #{tpu_custom_call.1} parent=87 // pred_check_branch
          %532 = sbr.rel (%p530) target = $region92
        $region91: #{tpu_custom_call.1} parent=87 // pred_region
          %534 = dma.done [#allocation4], 256
        $region92: #{tpu_custom_call.1} parent=87 // pred_fallthru
          _
        // Predicated region
        $region93: #{tpu_custom_call.1} parent=87 // pred_check
          %p535 = pneg %p138
        $region94: #{tpu_custom_call.1} parent=87 // pred_check_branch
          %537 = sbr.rel (%p535) target = $region96
        $region95: #{tpu_custom_call.1} parent=87 // pred_region
          %539 = dma.done [#allocation7], 256
        $region96: #{tpu_custom_call.1} parent=87 // pred_fallthru
          _
        // Predicated region
        $region97: #{tpu_custom_call.1} parent=87 // pred_check
          %p540 = pneg %p327
        $region98: #{tpu_custom_call.1} parent=87 // pred_check_branch
          %542 = sbr.rel (%p540) target = $region100
        $region99: #{tpu_custom_call.1} parent=87 // pred_region
          %544 = dma.done [#allocation7], 256
        $region100: #{tpu_custom_call.1} parent=87 // pred_fallthru
          _
        %p545 = scmp.lt.s32.totalorder %s33, 1
        %s546 = scalar_select %p545, %s33, 1
        %s547 = smul.addr %s546, 8
        %s548 = scalar_lea.vmem %s0, %s547
        %p549 = pneg %p54
        %p550 = pneg %p51
        %p551 = pneg %p75
        %p552 = pneg %p72
        %p553 = pneg %p96
        %p554 = pneg %p93
        %p555 = pneg %p117
        %p556 = pneg %p114
        %p557 = pneg %p138
        %p558 = pneg %p135
        %p559 = pneg %p159
        %p560 = pneg %p156
        %p561 = pneg %p180
        %p562 = pneg %p177
        %p563 = pneg %p201
        %p564 = pneg %p198
        %p565 = pneg %p222
        %p566 = pneg %p219
        %p567 = pneg %p243
        %p568 = pneg %p240
        %p569 = pneg %p264
        %p570 = pneg %p261
        %p571 = pneg %p285
        %p572 = pneg %p282
        %p573 = pneg %p306
        %p574 = pneg %p303
        %p575 = pneg %p327
        %p576 = pneg %p324
        %p577 = pneg %p348
        %p578 = pneg %p345
        %p579 = pneg %p369
        %p580 = pneg %p366
        %p581 = pneg %p390
        %p582 = pneg %p387
        %p583 = pneg %p416
        %p584 = pneg %p413
        %s585 = sand.u32 %s403, 1
        %s586 = scalar_lea.sflag [#allocation5], %s585
        %s587 = sand.u32 %s403, 1
        %s588 = smul.addr %s587, 8
        %s589 = scalar_lea.vmem [#allocation9], %s588
        %p590 = scmp.lt.s32.totalorder %s33, 1
        %s591 = scalar_select %p590, %s33, 1
        %s592 = smul.addr %s591, 8
        %s593 = scalar_lea.vmem %s0, %s592
        %v595 = vld [vmem:[%s593] sm:$0xff]
        %v596 = vpack.c.bf16 %v595, %v595
        %v597 = vld [vmem:[%s1] sm:$0xf]
        %v598 = vld [vmem:[%s1 + $0x4] sm:$0xf]
        %v599 = vld [vmem:[%s1 + $0x8] sm:$0xf]
        %v600 = vld [vmem:[%s1 + $0xc] sm:$0xf]
        %v601 = vld [vmem:[%s5] sm:$0x1]
        %v603 = vperm.slane %v601, 0
        %v609 = vunpack.c.l.b16 %v597
        %v610 = vunpack.c.l.b16 %v598
        %v611 = vunpack.c.l.b16 %v599
        %v612 = vunpack.c.l.b16 %v600
        %v613 = vpack.c.b16 %v610, %v609
        %v614 = vpack.c.b16 %v612, %v611
        %vm617 = vcmask 261120
        %v619 = vsel %vm617, %v596, 0
        %621 = vmatpush.bf16.msra.mxu0 0
        %622 = vmatpush.bf16.msra.mxu0 0
        %623 = vmatpush.bf16.msra.mxu0 0
        %624 = vmatpush.bf16.msra.mxu0 0
        %625 = vmatpush.bf16.msra.mxu0 0
        %626 = vmatpush.bf16.msra.mxu0 0
        %627 = vmatpush.bf16.msra.mxu0 %v614
        %628 = vmatpush.bf16.msra.mxu0 %v613
        %629 = vmatmul.bf16.gmra.mxu0 %v619
        %v630 = vpop.f32.mrf.mxu0
        %v631 = vadd.f32 %v603, %v630
        %v632 = vpop.f32.mrf.mxu0
        %633 = vdwg.mxu0
        %v634 = vld [vmem:[%s2] sm:$0xf]
        %v635 = vld [vmem:[%s2 + $0x4] sm:$0xf]
        %v636 = vld [vmem:[%s2 + $0x8] sm:$0xf]
        %v637 = vld [vmem:[%s2 + $0xc] sm:$0xf]
        %v638 = vld [vmem:[%s6] sm:$0x1]
        %v640 = vperm.slane %v638, 0
        %v646 = vunpack.c.l.b16 %v634
        %v647 = vunpack.c.l.b16 %v635
        %v648 = vunpack.c.l.b16 %v636
        %v649 = vunpack.c.l.b16 %v637
        %v650 = vpack.c.b16 %v647, %v646
        %v651 = vpack.c.b16 %v649, %v648
        %654 = vmatpush.bf16.msra.mxu0 0
        %655 = vmatpush.bf16.msra.mxu0 0
        %656 = vmatpush.bf16.msra.mxu0 0
        %657 = vmatpush.bf16.msra.mxu0 0
        %658 = vmatpush.bf16.msra.mxu0 0
        %659 = vmatpush.bf16.msra.mxu0 0
        %660 = vmatpush.bf16.msra.mxu0 %v651
        %661 = vmatpush.bf16.msra.mxu0 %v650
        %662 = vmatmul.bf16.gmra.mxu0 %v619
        %v663 = vpop.f32.mrf.mxu0
        %v664 = vadd.f32 %v640, %v663
        %v665 = vpop.f32.mrf.mxu0
        %666 = vdwg.mxu0
        %v667 = vld [vmem:[#allocation3] sm:$0xf]
        %v668 = vld [vmem:[#allocation3 + $0x4] sm:$0xf]
        %v669 = vld [vmem:[#allocation3 + $0x8] sm:$0xf]
        %v670 = vld [vmem:[#allocation3 + $0xc] sm:$0xf]
        %v671 = vld [vmem:[%s7] sm:$0x1]
        %v673 = vperm.slane %v671, 0
        %v679 = vunpack.c.l.b16 %v667
        %v680 = vunpack.c.l.b16 %v668
        %v681 = vunpack.c.l.b16 %v669
        %v682 = vunpack.c.l.b16 %v670
        %v683 = vpack.c.b16 %v680, %v679
        %v684 = vpack.c.b16 %v682, %v681
        %687 = vmatpush.bf16.msra.mxu0 0
        %688 = vmatpush.bf16.msra.mxu0 0
        %689 = vmatpush.bf16.msra.mxu0 0
        %690 = vmatpush.bf16.msra.mxu0 0
        %691 = vmatpush.bf16.msra.mxu0 0
        %692 = vmatpush.bf16.msra.mxu0 0
        %693 = vmatpush.bf16.msra.mxu0 %v684
        %694 = vmatpush.bf16.msra.mxu0 %v683
        %695 = vmatmul.bf16.gmra.mxu0 %v619
        %v696 = vpop.f32.mrf.mxu0
        %v697 = vadd.f32 %v673, %v696
        %v698 = vpop.f32.mrf.mxu0
        %699 = vdwg.mxu0
        %v700 = vmul.f32 %v631, 0.35355338
        %v701 = vpack.c.bf16 %v700, %v700
        %v702 = vpack.c.bf16 %v664, %v664
        %v703 = vpack.c.bf16 %v697, %v697
        %vm704 = vcmask 64512
        %v706 = vsel %vm704, %v701, 0
        %v709 = vsel %vm704, %v702, 0
        %711 = vmatpush.bf16.xpose.msra.mxu0 0
        %712 = vmatpush.bf16.xpose.msra.mxu0 0
        %713 = vmatpush.bf16.xpose.msra.mxu0 0
        %714 = vmatpush.bf16.xpose.msra.mxu0 0
        %715 = vmatpush.bf16.xpose.msra.mxu0 0
        %716 = vmatpush.bf16.xpose.msra.mxu0 0
        %717 = vmatpush.bf16.xpose.msra.mxu0 0
        %718 = vmatpush.bf16.xpose.msra.mxu0 %v709
        %719 = vmatmul.bf16.gmra.mxu0 %v706
        %v720 = vpop.f32.mrf.mxu0
        %v721 = vadd.f32 0.0, %v720
        %v722 = vpop.f32.mrf.mxu0
        %723 = vdwg.mxu0
        %v724 = vsel %vm704, %v721, -inf
        %725 = vmax.xlane.f32.xlu0 %v724
        %v726 = vpop.xlane.xlu0 %725
        %v727 = vsub.f32 %v721, %v726
        %v728 = vpack.c.bf16 %v727, %v727
        %v729 = vunpack.c.l.bf16 %v728
        %v730 = vmul.f32 %v729, 1.442695
        %v731 = vpow.pop %v730
        %v732 = vpack.c.bf16 %v731, %v731
        %v733 = vunpack.c.l.bf16 %v732
        %v734 = vsel %vm704, %v733, 0.0
        %735 = vadd.xlane.f32.xlu0 %v734
        %v736 = vpop.xlane.xlu0 %735
        %v737 = vrcp.pop %v736
        %v739 = vsel %vm704, %v732, 0
        %vm741 = vcmask 1043456
        %v743 = vsel %vm741, %v703, 0
        %745 = vmatpush.bf16.msra.mxu0 0
        %746 = vmatpush.bf16.msra.mxu0 0
        %747 = vmatpush.bf16.msra.mxu0 0
        %748 = vmatpush.bf16.msra.mxu0 0
        %749 = vmatpush.bf16.msra.mxu0 0
        %750 = vmatpush.bf16.msra.mxu0 0
        %751 = vmatpush.bf16.msra.mxu0 0
        %752 = vmatpush.bf16.msra.mxu0 %v743
        %753 = vmatmul.bf16.gmra.mxu0 %v739
        %v754 = vpop.f32.mrf.mxu0
        %v755 = vadd.f32 0.0, %v754
        %v756 = vpop.f32.mrf.mxu0
        %757 = vdwg.mxu0
        %v758 = vmul.f32 %v755, %v737
        %v759 = vpack.c.bf16 %v758, %v758
        %vm760 = vcmask 60416
        %761 = vst.msk [vmem:[#allocation2] sm:$0xf] %vm760, %v759
        %763 = vrot.lane.b32.xlu0 %v701, 120
        %v764 = vpop.permute.xlu0 %763
        %766 = vrot.lane.b32.xlu0 %v702, 120
        %v767 = vpop.permute.xlu0 %766
        %v769 = vsel %vm704, %v764, 0
        %v772 = vsel %vm704, %v767, 0
        %774 = vmatpush.bf16.xpose.msra.mxu0 0
        %775 = vmatpush.bf16.xpose.msra.mxu0 0
        %776 = vmatpush.bf16.xpose.msra.mxu0 0
        %777 = vmatpush.bf16.xpose.msra.mxu0 0
        %778 = vmatpush.bf16.xpose.msra.mxu0 0
        %779 = vmatpush.bf16.xpose.msra.mxu0 0
        %780 = vmatpush.bf16.xpose.msra.mxu0 0
        %781 = vmatpush.bf16.xpose.msra.mxu0 %v772
        %782 = vmatmul.bf16.gmra.mxu0 %v769
        %v783 = vpop.f32.mrf.mxu0
        %v784 = vadd.f32 0.0, %v783
        %v785 = vpop.f32.mrf.mxu0
        %786 = vdwg.mxu0
        %v787 = vsel %vm704, %v784, -inf
        %788 = vmax.xlane.f32.xlu0 %v787
        %v789 = vpop.xlane.xlu0 %788
        %v790 = vsub.f32 %v784, %v789
        %v791 = vpack.c.bf16 %v790, %v790
        %v792 = vunpack.c.l.bf16 %v791
        %v793 = vmul.f32 %v792, 1.442695
        %v794 = vpow.pop %v793
        %v795 = vpack.c.bf16 %v794, %v794
        %v796 = vunpack.c.l.bf16 %v795
        %v797 = vsel %vm704, %v796, 0.0
        %798 = vadd.xlane.f32.xlu0 %v797
        %v799 = vpop.xlane.xlu0 %798
        %v800 = vrcp.pop %v799
        %802 = vrot.lane.b32.xlu0 %v703, 120
        %v803 = vpop.permute.xlu0 %802
        %v805 = vsel %vm704, %v795, 0
        %v808 = vsel %vm741, %v803, 0
        %810 = vmatpush.bf16.msra.mxu0 0
        %811 = vmatpush.bf16.msra.mxu0 0
        %812 = vmatpush.bf16.msra.mxu0 0
        %813 = vmatpush.bf16.msra.mxu0 0
        %814 = vmatpush.bf16.msra.mxu0 0
        %815 = vmatpush.bf16.msra.mxu0 0
        %816 = vmatpush.bf16.msra.mxu0 0
        %817 = vmatpush.bf16.msra.mxu0 %v808
        %818 = vmatmul.bf16.gmra.mxu0 %v805
        %v819 = vpop.f32.mrf.mxu0
        %v820 = vadd.f32 0.0, %v819
        %v821 = vpop.f32.mrf.mxu0
        %822 = vdwg.mxu0
        %v823 = vmul.f32 %v820, %v800
        %v824 = vpack.c.bf16 %v823, %v823
        %826 = vrot.lane.b32.xlu0 %v824, 8
        %v827 = vpop.permute.xlu0 %826
        %vm829 = vcmask 126016
        %830 = vst.msk [vmem:[#allocation2] sm:$0xf] %vm829, %v827
        %831 = vrot.lane.b32.xlu0 %v701, 112
        %v832 = vpop.permute.xlu0 %831
        %833 = vrot.lane.b32.xlu0 %v702, 112
        %v834 = vpop.permute.xlu0 %833
        %v836 = vsel %vm704, %v832, 0
        %v839 = vsel %vm704, %v834, 0
        %841 = vmatpush.bf16.xpose.msra.mxu0 0
        %842 = vmatpush.bf16.xpose.msra.mxu0 0
        %843 = vmatpush.bf16.xpose.msra.mxu0 0
        %844 = vmatpush.bf16.xpose.msra.mxu0 0
        %845 = vmatpush.bf16.xpose.msra.mxu0 0
        %846 = vmatpush.bf16.xpose.msra.mxu0 0
        %847 = vmatpush.bf16.xpose.msra.mxu0 0
        %848 = vmatpush.bf16.xpose.msra.mxu0 %v839
        %849 = vmatmul.bf16.gmra.mxu0 %v836
        %v850 = vpop.f32.mrf.mxu0
        %v851 = vadd.f32 0.0, %v850
        %v852 = vpop.f32.mrf.mxu0
        %853 = vdwg.mxu0
        %v854 = vsel %vm704, %v851, -inf
        %855 = vmax.xlane.f32.xlu0 %v854
        %v856 = vpop.xlane.xlu0 %855
        %v857 = vsub.f32 %v851, %v856
        %v858 = vpack.c.bf16 %v857, %v857
        %v859 = vunpack.c.l.bf16 %v858
        %v860 = vmul.f32 %v859, 1.442695
        %v861 = vpow.pop %v860
        %v862 = vpack.c.bf16 %v861, %v861
        %v863 = vunpack.c.l.bf16 %v862
        %v864 = vsel %vm704, %v863, 0.0
        %865 = vadd.xlane.f32.xlu0 %v864
        %v866 = vpop.xlane.xlu0 %865
        %v867 = vrcp.pop %v866
        %868 = vrot.lane.b32.xlu0 %v703, 112
        %v869 = vpop.permute.xlu0 %868
        %v871 = vsel %vm704, %v862, 0
        %v874 = vsel %vm741, %v869, 0
        %876 = vmatpush.bf16.msra.mxu0 0
        %877 = vmatpush.bf16.msra.mxu0 0
        %878 = vmatpush.bf16.msra.mxu0 0
        %879 = vmatpush.bf16.msra.mxu0 0
        %880 = vmatpush.bf16.msra.mxu0 0
        %881 = vmatpush.bf16.msra.mxu0 0
        %882 = vmatpush.bf16.msra.mxu0 0
        %883 = vmatpush.bf16.msra.mxu0 %v874
        %884 = vmatmul.bf16.gmra.mxu0 %v871
        %v885 = vpop.f32.mrf.mxu0
        %v886 = vadd.f32 0.0, %v885
        %v887 = vpop.f32.mrf.mxu0
        %888 = vdwg.mxu0
        %v889 = vmul.f32 %v886, %v867
        %v890 = vpack.c.bf16 %v889, %v889
        %892 = vrot.lane.b32.xlu0 %v890, 16
        %v893 = vpop.permute.xlu0 %892
        %vm895 = vcmask 191616
        %896 = vst.msk [vmem:[#allocation2] sm:$0xf] %vm895, %v893
        %897 = vrot.lane.b32.xlu0 %v701, 104
        %v898 = vpop.permute.xlu0 %897
        %899 = vrot.lane.b32.xlu0 %v702, 104
        %v900 = vpop.permute.xlu0 %899
        %v902 = vsel %vm704, %v898, 0
        %v905 = vsel %vm704, %v900, 0
        %907 = vmatpush.bf16.xpose.msra.mxu0 0
        %908 = vmatpush.bf16.xpose.msra.mxu0 0
        %909 = vmatpush.bf16.xpose.msra.mxu0 0
        %910 = vmatpush.bf16.xpose.msra.mxu0 0
        %911 = vmatpush.bf16.xpose.msra.mxu0 0
        %912 = vmatpush.bf16.xpose.msra.mxu0 0
        %913 = vmatpush.bf16.xpose.msra.mxu0 0
        %914 = vmatpush.bf16.xpose.msra.mxu0 %v905
        %915 = vmatmul.bf16.gmra.mxu0 %v902
        %v916 = vpop.f32.mrf.mxu0
        %v917 = vadd.f32 0.0, %v916
        %v918 = vpop.f32.mrf.mxu0
        %919 = vdwg.mxu0
        %v920 = vsel %vm704, %v917, -inf
        %921 = vmax.xlane.f32.xlu0 %v920
        %v922 = vpop.xlane.xlu0 %921
        %v923 = vsub.f32 %v917, %v922
        %v924 = vpack.c.bf16 %v923, %v923
        %v925 = vunpack.c.l.bf16 %v924
        %v926 = vmul.f32 %v925, 1.442695
        %v927 = vpow.pop %v926
        %v928 = vpack.c.bf16 %v927, %v927
        %v929 = vunpack.c.l.bf16 %v928
        %v930 = vsel %vm704, %v929, 0.0
        %931 = vadd.xlane.f32.xlu0 %v930
        %v932 = vpop.xlane.xlu0 %931
        %v933 = vrcp.pop %v932
        %934 = vrot.lane.b32.xlu0 %v703, 104
        %v935 = vpop.permute.xlu0 %934
        %v937 = vsel %vm704, %v928, 0
        %v940 = vsel %vm741, %v935, 0
        %942 = vmatpush.bf16.msra.mxu0 0
        %943 = vmatpush.bf16.msra.mxu0 0
        %944 = vmatpush.bf16.msra.mxu0 0
        %945 = vmatpush.bf16.msra.mxu0 0
        %946 = vmatpush.bf16.msra.mxu0 0
        %947 = vmatpush.bf16.msra.mxu0 0
        %948 = vmatpush.bf16.msra.mxu0 0
        %949 = vmatpush.bf16.msra.mxu0 %v940
        %950 = vmatmul.bf16.gmra.mxu0 %v937
        %v951 = vpop.f32.mrf.mxu0
        %v952 = vadd.f32 0.0, %v951
        %v953 = vpop.f32.mrf.mxu0
        %954 = vdwg.mxu0
        %v955 = vmul.f32 %v952, %v933
        %v956 = vpack.c.bf16 %v955, %v955
        %958 = vrot.lane.b32.xlu0 %v956, 24
        %v959 = vpop.permute.xlu0 %958
        %vm961 = vcmask 257216
        %962 = vst.msk [vmem:[#allocation2] sm:$0xf] %vm961, %v959
        %v963 = vld [vmem:[#allocation2] sm:$0xf]
        %v964 = vld [vmem:[#allocation6] sm:$0xf]
        %v965 = vld [vmem:[#allocation6 + $0x4] sm:$0xf]
        %v966 = vld [vmem:[#allocation6 + $0x8] sm:$0xf]
        %v967 = vld [vmem:[#allocation6 + $0xc] sm:$0xf]
        %v968 = vld [vmem:[%s8] sm:$0x1]
        %v970 = vperm.slane %v968, 0
        %v976 = vunpack.c.l.b16 %v964
        %v977 = vunpack.c.l.b16 %v965
        %v978 = vunpack.c.l.b16 %v966
        %v979 = vunpack.c.l.b16 %v967
        %v980 = vpack.c.b16 %v977, %v976
        %v981 = vpack.c.b16 %v979, %v978
        %v985 = vsel %vm617, %v963, 0
        %987 = vmatpush.bf16.msra.mxu0 0
        %988 = vmatpush.bf16.msra.mxu0 0
        %989 = vmatpush.bf16.msra.mxu0 0
        %990 = vmatpush.bf16.msra.mxu0 0
        %991 = vmatpush.bf16.msra.mxu0 0
        %992 = vmatpush.bf16.msra.mxu0 0
        %993 = vmatpush.bf16.msra.mxu0 %v981
        %994 = vmatpush.bf16.msra.mxu0 %v980
        %995 = vmatmul.bf16.gmra.mxu0 %v985
        %v996 = vpop.f32.mrf.mxu0
        %v997 = vadd.f32 %v970, %v996
        %v998 = vpop.f32.mrf.mxu0
        %999 = vdwg.mxu0
        %v1000 = vadd.f32 %v595, %v997
        %v1001 = vld [vmem:[%s9] sm:$0x1]
        %v1002 = vld [vmem:[%s10] sm:$0x1]
        %v1003 = vsel %vm617, %v1000, 0.0
        %1004 = vadd.xlane.f32.xlu0 %v1003
        %v1005 = vpop.xlane.xlu0 %1004
        %v1006 = vrcp.pop 32.0
        %v1007 = vmul.f32 32.0, %v1006
        %v1008 = vsub.f32 1.0, %v1007
        %v1009 = vmul.f32 %v1006, %v1008
        %v1010 = vadd.f32 %v1006, %v1009
        %vm1011 = vweird.f32 %v1006
        %v1012 = vsel %vm1011, %v1006, %v1010
        %v1013 = vmul.f32 %v1005, %v1012
        %v1014 = vsub.f32 %v1000, %v1013
        %v1015 = vmul.f32 %v1014, %v1014
        %v1016 = vsel %vm617, %v1015, 0.0
        %1017 = vadd.xlane.f32.xlu0 %v1016
        %v1018 = vpop.xlane.xlu0 %1017
        %v1019 = vmul.f32 %v1018, %v1012
        %v1020 = vadd.f32 %v1019, 1e-05
        %v1021 = vrsqrt.pop %v1020
        %v1022 = vmul.f32 %v1021, %v1020
        %v1023 = vmul.f32 %v1022, %v1021
        %v1024 = vmul.f32 0.5, %v1023
        %v1025 = vsub.f32 1.5, %v1024
        %v1026 = vmul.f32 %v1021, %v1025
        %vm1027 = vweird.f32 %v1020
        %vm1028 = vweird.f32 %v1021
        %vm1029 = vmor %vm1027, %vm1028
        %v1030 = vsel %vm1029, %v1021, %v1026
        %v1031 = vmul.f32 %v1014, %v1030
        %v1033 = vperm.slane %v1001, 0
        %v1035 = vmul.f32 %v1031, %v1033
        %v1037 = vperm.slane %v1002, 0
        %v1039 = vadd.f32 %v1035, %v1037
        %v1040 = vpack.c.bf16 %v1039, %v1039
        %v1041 = vld [vmem:[#allocation8] sm:$0xf]
        %v1042 = vld [vmem:[#allocation8 + $0x4] sm:$0xf]
        %v1043 = vld [vmem:[#allocation8 + $0x8] sm:$0xf]
        %v1044 = vld [vmem:[#allocation8 + $0xc] sm:$0xf]
        %v1045 = vld [vmem:[%s14] sm:$0x1]
        %v1047 = vperm.slane %v1045, 0
        %v1053 = vunpack.c.l.b16 %v1041
        %v1054 = vunpack.c.l.b16 %v1042
        %v1055 = vunpack.c.l.b16 %v1043
        %v1056 = vunpack.c.l.b16 %v1044
        %v1057 = vpack.c.b16 %v1054, %v1053
        %v1058 = vpack.c.b16 %v1056, %v1055
        %v1062 = vsel %vm617, %v1040, 0
        %1064 = vmatpush.bf16.msra.mxu0 0
        %1065 = vmatpush.bf16.msra.mxu0 0
        %1066 = vmatpush.bf16.msra.mxu0 0
        %1067 = vmatpush.bf16.msra.mxu0 0
        %1068 = vmatpush.bf16.msra.mxu0 0
        %1069 = vmatpush.bf16.msra.mxu0 0
        %1070 = vmatpush.bf16.msra.mxu0 %v1058
        %1071 = vmatpush.bf16.msra.mxu0 %v1057
        %1072 = vmatmul.bf16.gmra.mxu0 %v1062
        %v1073 = vpop.f32.mrf.mxu0
        %v1074 = vadd.f32 %v1047, %v1073
        %v1075 = vpop.f32.mrf.mxu0
        %1076 = vdwg.mxu0
        %v1077 = vpack.c.bf16 %v1074, %v1074
        %v1078 = vunpack.c.l.bf16 %v1077
        %v1079 = vmul.f32 %v1078, 0.70703125
        %v1080 = vpack.c.bf16 %v1079, %v1079
        %v1081 = vunpack.c.l.bf16 %v1080
        %v1082 = vmul.f32 %v1081, %v1081
        %v1083 = vmin.f32 16.0, %v1082
        %v1084 = vmul.f32 %v1083, 2.1237322e-06
        %v1085 = vadd.f32 %v1084, 0.00028619796
        %v1086 = vmul.f32 %v1083, %v1085
        %v1087 = vadd.f32 %v1086, 0.0036580483
        %v1088 = vmul.f32 %v1083, %v1087
        %v1089 = vadd.f32 %v1088, 0.05243302
        %v1090 = vmul.f32 %v1083, %v1089
        %v1091 = vadd.f32 %v1090, 0.18741608
        %v1092 = vmul.f32 %v1083, %v1091
        %v1093 = vadd.f32 %v1092, 1.1283791
        %v1094 = vmul.f32 %v1081, %v1093
        %v1095 = vmul.f32 %v1083, 3.8918573e-05
        %v1096 = vadd.f32 %v1095, 0.001143296
        %v1097 = vmul.f32 %v1083, %v1096
        %v1098 = vadd.f32 %v1097, 0.014752088
        %v1099 = vmul.f32 %v1083, %v1098
        %v1100 = vadd.f32 %v1099, 0.112945676
        %v1101 = vmul.f32 %v1083, %v1100
        %v1102 = vadd.f32 %v1101, 0.4994258
        %v1103 = vmul.f32 %v1083, %v1102
        %v1104 = vadd.f32 %v1103, 1.0
        %v1105 = vrcp.pop %v1104
        %v1106 = vmul.f32 %v1104, %v1105
        %v1107 = vsub.f32 1.0, %v1106
        %v1108 = vmul.f32 %v1105, %v1107
        %v1109 = vadd.f32 %v1105, %v1108
        %vm1110 = vweird.f32 %v1104
        %vm1111 = vweird.f32 %v1105
        %vm1112 = vmor %vm1110, %vm1111
        %v1113 = vsel %vm1112, %v1105, %v1109
        %v1114 = vand.u32 2147483647, %v1104
        %vm1115 = vcmp.eq.f32.partialorder %v1114, 8.507059e+37
        %v1116 = vand.u32 %v1104, 2147483648
        %v1117 = vor.u32 1.1754944e-38, %v1116
        %v1118 = vsel %vm1115, %v1117, %v1113
        %v1119 = vmul.f32 %v1094, %v1118
        %v1120 = vmin.f32 %v1119, 1.0
        %v1121 = vmax.f32 %v1120, -1.0
        %v1122 = vpack.c.bf16 %v1121, %v1121
        %v1123 = vunpack.c.l.bf16 %v1122
        %v1124 = vadd.f32 %v1123, 1.0
        %v1125 = vpack.c.bf16 %v1124, %v1124
        %v1126 = vunpack.c.l.bf16 %v1125
        %v1127 = vmul.f32 %v1126, 0.5
        %v1128 = vpack.c.bf16 %v1127, %v1127
        %v1129 = vunpack.c.l.bf16 %v1128
        %v1130 = vmul.f32 %v1078, %v1129
        %v1131 = vpack.c.bf16 %v1130, %v1130
        %v1132 = vld [vmem:[%s15] sm:$0xf]
        %v1133 = vld [vmem:[%s15 + $0x4] sm:$0xf]
        %v1134 = vld [vmem:[%s15 + $0x8] sm:$0xf]
        %v1135 = vld [vmem:[%s15 + $0xc] sm:$0xf]
        %v1136 = vld [vmem:[%s15 + $0x10] sm:$0xf]
        %v1137 = vld [vmem:[%s15 + $0x14] sm:$0xf]
        %v1138 = vld [vmem:[%s15 + $0x18] sm:$0xf]
        %v1139 = vld [vmem:[%s15 + $0x1c] sm:$0xf]
        %v1140 = vld [vmem:[%s16] sm:$0x1]
        %v1142 = vperm.slane %v1140, 0
        %v1152 = vunpack.c.l.b16 %v1132
        %v1153 = vunpack.c.l.b16 %v1133
        %v1154 = vunpack.c.l.b16 %v1134
        %v1155 = vunpack.c.l.b16 %v1135
        %v1156 = vunpack.c.l.b16 %v1136
        %v1157 = vunpack.c.l.b16 %v1137
        %v1158 = vunpack.c.l.b16 %v1138
        %v1159 = vunpack.c.l.b16 %v1139
        %v1160 = vpack.c.b16 %v1153, %v1152
        %v1161 = vpack.c.b16 %v1155, %v1154
        %v1162 = vpack.c.b16 %v1157, %v1156
        %v1163 = vpack.c.b16 %v1159, %v1158
        %vm1168 = vcmask 523264
        %v1170 = vsel %vm1168, %v1131, 0
        %1172 = vmatpush.bf16.msra.mxu0 0
        %1173 = vmatpush.bf16.msra.mxu0 0
        %1174 = vmatpush.bf16.msra.mxu0 0
        %1175 = vmatpush.bf16.msra.mxu0 0
        %1176 = vmatpush.bf16.msra.mxu0 %v1163
        %1177 = vmatpush.bf16.msra.mxu0 %v1162
        %1178 = vmatpush.bf16.msra.mxu0 %v1161
        %1179 = vmatpush.bf16.msra.mxu0 %v1160
        %1180 = vmatmul.bf16.gmra.mxu0 %v1170
        %v1181 = vpop.f32.mrf.mxu0
        %v1182 = vadd.f32 %v1142, %v1181
        %v1183 = vpop.f32.mrf.mxu0
        %1184 = vdwg.mxu0
        %v1185 = vadd.f32 %v1039, %v1182
        %v1186 = vld [vmem:[%s11] sm:$0x1]
        %v1187 = vld [vmem:[%s12] sm:$0x1]
        %v1188 = vsel %vm617, %v1185, 0.0
        %1189 = vadd.xlane.f32.xlu0 %v1188
        %v1190 = vpop.xlane.xlu0 %1189
        %v1191 = vmul.f32 %v1190, %v1012
        %v1192 = vsub.f32 %v1185, %v1191
        %v1193 = vmul.f32 %v1192, %v1192
        %v1194 = vsel %vm617, %v1193, 0.0
        %1195 = vadd.xlane.f32.xlu0 %v1194
        %v1196 = vpop.xlane.xlu0 %1195
        %v1197 = vmul.f32 %v1196, %v1012
        %v1198 = vadd.f32 %v1197, 1e-05
        %v1199 = vrsqrt.pop %v1198
        %v1200 = vmul.f32 %v1199, %v1198
        %v1201 = vmul.f32 %v1200, %v1199
        %v1202 = vmul.f32 0.5, %v1201
        %v1203 = vsub.f32 1.5, %v1202
        %v1204 = vmul.f32 %v1199, %v1203
        %vm1205 = vweird.f32 %v1198
        %vm1206 = vweird.f32 %v1199
        %vm1207 = vmor %vm1205, %vm1206
        %v1208 = vsel %vm1207, %v1199, %v1204
        %v1209 = vmul.f32 %v1192, %v1208
        %v1211 = vperm.slane %v1186, 0
        %v1213 = vmul.f32 %v1209, %v1211
        %v1215 = vperm.slane %v1187, 0
        %v1217 = vadd.f32 %v1213, %v1215
        %1218 = vst.msk [vmem:[%s589] sm:$0xff] %vm617, %v1217
        %s1219 = sand.u32 %s403, 1
        %s1220 = scalar_lea.sflag [#allocation5], %s1219
        %s1221 = sand.u32 %s403, 1
        %s1222 = smul.addr %s1221, 8
        %s1223 = scalar_lea.vmem [#allocation9], %s1222
        // Predicated region
        $region101: #{tpu_custom_call.1} parent=87 // pred_check
          %p1224 = pneg %p413
        $region102: #{tpu_custom_call.1} parent=87 // pred_check_branch
          %1226 = sbr.rel (%p1224) target = $region104
        $region103: #{tpu_custom_call.1} parent=87 // pred_region
          %1228 = vsyncadd %s1220, 0
          %s1229 = smul.addr %s33, 8
          %s1230 = scalar_lea.hbm %s17, %s1229
          %s1232 = sshll.u32 %s1223, 4
          %s1233 = int_to_ptr.vmem [resolvable:$true] %s1232
          %s1234 = sshll.u32 %s1230, 4
          %s1235 = int_to_ptr.hbm [resolvable:$true] %s1234
          %1237 = dma.vmem_to_hbm [thread:$0]  %s1233, 128, %s1235, %s1220
        $region104: #{tpu_custom_call.1} parent=87 // pred_fallthru
          _
      $region88: #{tpu_custom_call.1} parent=5 // pred_fallthru
        _
      %p1238 = scmp.le.s32.totalorder 2, %s28
      // Predicated region
      $region105: #{tpu_custom_call.1} parent=5 // pred_check
        %p1239 = pneg %p1238
      $region106: #{tpu_custom_call.1} parent=5 // pred_check_branch
        %1241 = sbr.rel (%p1239) target = $region108
      $region107: #{tpu_custom_call.1} parent=5 // pred_region
        %s1242 = ssub.s32 %s28, 2
        // Predicated region
        $region109: #{tpu_custom_call.1} parent=107 // pred_check
          %p1243 = pneg %p419
        $region110: #{tpu_custom_call.1} parent=107 // pred_check_branch
          %1245 = sbr.rel (%p1243) target = $region112
        $region111: #{tpu_custom_call.1} parent=107 // pred_region
          %s1246 = sand.u32 %s404, 1
          %s1247 = scalar_lea.sflag [#allocation5], %s1246
          %s1248 = sand.u32 %s404, 1
          %s1249 = smul.addr %s1248, 8
          %s1250 = scalar_lea.vmem [#allocation9], %s1249
          %1252 = dma.done %s1247, 128
        $region112: #{tpu_custom_call.1} parent=107 // pred_fallthru
          _
      $region108: #{tpu_custom_call.1} parent=5 // pred_fallthru
        _
    $region6: #{tpu_custom_call.1} parent=1 // loop_footer
      %s32 = sadd.s32 1, %s28
    $region7: #{tpu_custom_call.1} parent=1 // loop_footer_branch
      %27 = sbr.rel target = $region3
    $region8: #{tpu_custom_call.1} parent=1 // loop_exit
      _
    %1253 = vsyncpa [#allocation4], 1
    %s1254 = scalar_lea.sflag [#allocation4], 1
    %1255 = vsyncpa %s1254, 1
    %1256 = vsyncpa [#allocation7], 1
    %1257 = vsyncpa [#allocation5], 1
    %s1258 = scalar_lea.sflag [#allocation5], 1
    %1259 = vsyncpa %s1258, 1

</llo_original>
